<compile_context>
chip_gen: v7x
topology: tpu7x:2x2x1
jax: 0.10.0
libtpu: 0.0.40
codegen_flags: <defaults>
</compile_context>

<pallas_src>
import jax
import jax.numpy as jnp
from jax.experimental import pallas as pl
from jax.experimental.pallas import tpu as pltpu


# --------------------------------------------------------------------------
# Kernel
# --------------------------------------------------------------------------
def _make_kernel(compute_dtype):
    def kernel(x_ref, y_ref, wx_ref, wy_ref, wf_ref, o_ref):
        _, tn, C = x_ref.shape
        Cr = wx_ref.shape[1]

        def mm(a, w):
            # MXU matmul with f32 accumulation; optional bf16 operands.
            if compute_dtype is not None:
                a = a.astype(compute_dtype)
                w = w.astype(compute_dtype)
            return jnp.dot(a, w, preferred_element_type=jnp.float32)

        # ---- x path: 1x1 conv as one big-M (4*tn, C) @ (C, Cr) matmul ------
        xc = mm(x_ref[...].reshape(4 * tn, C), wx_ref[...]).reshape(4, tn, Cr)
        # Unscaled Haar butterfly (the combined 0.25 scale is folded into wf
        # by the wrapper; legal since max(0.5a, 0.5b) = 0.5*max(a, b)).
        apb = xc[0] + xc[1]
        amb = xc[0] - xc[1]
        cpd = xc[2] + xc[3]
        cmd = xc[2] - xc[3]
        ll = apb + cpd            # LL subband comes from x only
        lh = apb - cpd
        hl = amb + cmd
        hh = amb - cmd

        # ---- y path: conv + butterfly, fused with max immediately ----------
        yc = mm(y_ref[...].reshape(4 * tn, C), wy_ref[...]).reshape(4, tn, Cr)
        apb = yc[0] + yc[1]
        amb = yc[0] - yc[1]
        cpd = yc[2] + yc[3]
        cmd = yc[2] - yc[3]
        lh = jnp.maximum(lh, apb - cpd)
        hl = jnp.maximum(hl, amb + cmd)
        hh = jnp.maximum(hh, amb - cmd)

        # ---- inverse Haar butterfly + final 1x1 conv, per sub-pixel slab ----
        # (no concatenate: avoids a (4*tn, Cr) VMEM copy and keeps the f32
        # output temporary at (tn, C) instead of (4*tn, C))
        spt = ll + lh
        smt = ll - lh
        upv = hl + hh
        umv = hl - hh
        slabs = (spt + upv, spt - upv, smt + umv, smt - umv)
        for p in range(4):
            out_p = mm(slabs[p], wf_ref[...])              # (tn, C), f32
            o_ref[p] = (out_p + x_ref[p]).astype(o_ref.dtype)

    return kernel


# --------------------------------------------------------------------------
# Tile selection / wrappers
# --------------------------------------------------------------------------
def _round_up(v, m):
    return (v + m - 1) // m * m


def _vmem_caps():
    """Generation-aware (block budget, vmem_limit_bytes)."""
    try:
        cap = int(pltpu.get_tpu_info().vmem_capacity_bytes)
    except Exception:
        cap = 64 * 1024 * 1024                      # unknown -> conservative
    if cap >= 128 * 1024 * 1024:                    # v5e / v6e
        return 96 * 1024 * 1024, 100 * 1024 * 1024
    return 34 * 1024 * 1024, 48 * 1024 * 1024      # v7x (64 MiB) / unknown


def _pick_tn(N, C, Cr, itemsize, tn_req, compute_dtype, vmem_budget):
    """Row-tile size: as large as fits the VMEM block budget, multiple of 8,
    >= 2 grid steps when the problem allows, and an even step count so v7x's
    two TensorCores get balanced work."""
    cast_item = jnp.dtype(compute_dtype).itemsize if compute_dtype else 0

    def est(t):
        blk = 4 * t * C * itemsize
        acts = 3 * 2 * blk                                  # x, y, out 2-buf
        wts = 2 * (2 * C * Cr + Cr * C) * itemsize          # weights 2-buf
        f32tmp = (12 * t * Cr + 2 * t * C) * 4              # subbands + out_p
        cast = 2 * 4 * t * C * cast_item                    # bf16 cast copies
        return acts + wts + f32tmp + cast

    tn = _round_up(max(8, min(tn_req, N)), 8)
    half = _round_up(pl.cdiv(N, 2), 8)
    if half >= 64:
        tn = min(tn, half)                                  # keep >= 2 steps
    while tn > 8 and est(tn) > vmem_budget:
        tn = max(8, _round_up(tn // 2, 8))

    steps = pl.cdiv(N, tn)
    if steps > 1 and steps % 2 == 1:                        # even out for 2 TC
        new_tn = max(8, _round_up(pl.cdiv(N, steps + 1), 8))
        if pl.cdiv(N, new_tn) % 2 == 0 and est(new_tn) <= vmem_budget:
            tn = new_tn
    return tn


def dwtconvfuse_blocks(xb, yb, wx, wy, wf, *, tn=512, compute_dtype=None):
    """Core fused op on the channels-last blocked layout (no transposes).

    xb, yb: (4, N, C) with N = B*(H//2)*(W//2); leading axis = the 4 pixels of
    each 2x2 spatial block [TL, TR, BL, BR]; channels on the lane dim.
    bf16 activations are supported (halves HBM traffic; f32 accumulation).
    wx, wy: (C, Cr); wf: (Cr, C) (raw conv weights; scale folded here).
    Returns (4, N, C).
    """
    four, N, C = xb.shape
    assert four == 4
    Cr = wx.shape[1]
    itemsize = jnp.dtype(xb.dtype).itemsize
    vmem_budget, vmem_limit = _vmem_caps()
    tn = _pick_tn(N, C, Cr, itemsize, tn, compute_dtype, vmem_budget)

    # x blocks are consumed before the matching output block is written and
    # never re-read -> safe to reuse x's HBM buffer for the output.  Only
    # enabled when the tile divides N (no ragged-tile edge cases).
    aliases = {0: 0} if N % tn == 0 else {}

    kernel = _make_kernel(compute_dtype)
    return pl.pallas_call(
        kernel,
        out_shape=jax.ShapeDtypeStruct((4, N, C), xb.dtype),
        grid=(pl.cdiv(N, tn),),
        in_specs=[
            pl.BlockSpec((4, tn, C), lambda i: (0, i, 0)),
            pl.BlockSpec((4, tn, C), lambda i: (0, i, 0)),
            pl.BlockSpec((C, Cr), lambda i: (0, 0)),
            pl.BlockSpec((C, Cr), lambda i: (0, 0)),
            pl.BlockSpec((Cr, C), lambda i: (0, 0)),
        ],
        out_specs=pl.BlockSpec((4, tn, C), lambda i: (0, i, 0)),
        input_output_aliases=aliases,
        compiler_params=pltpu.CompilerParams(
            dimension_semantics=("parallel",),
            vmem_limit_bytes=vmem_limit,
        ),
    )(xb, yb, wx, wy, (0.25 * wf).astype(wf.dtype))


def _to_blocks(t):
    # (B, C, H, W) -> (4, B*(H//2)*(W//2), C)
    B, C, H, W = t.shape
    tb = t.reshape(B, C, H // 2, 2, W // 2, 2)
    tb = tb.transpose(3, 5, 0, 2, 4, 1)          # (2, 2, B, Hh, Wh, C)
    return tb.reshape(4, B * (H // 2) * (W // 2), C)


def _from_blocks(o, B, C, H, W):
    # (4, B*(H//2)*(W//2), C) -> (B, C, H, W)
    ob = o.reshape(2, 2, B, H // 2, W // 2, C)
    ob = ob.transpose(2, 5, 3, 0, 4, 1)          # (B, C, Hh, 2, Wh, 2)
    return ob.reshape(B, C, H, W)


def dwtconvfuse(x, y, wx, wy, wf, *, tn=512, compute_dtype=None):
    """NCHW front-end matching the PyTorch module interface.

    Prefer `dwtconvfuse_blocks` in fused pipelines: the NCHW<->blocks
    transposes here are extra HBM passes outside the (memory-bound) kernel.
    """
    B, C, H, W = x.shape
    assert H % 2 == 0 and W % 2 == 0, "Haar DWT needs even H and W"
    xb = _to_blocks(x)
    yb = _to_blocks(y)
    ob = dwtconvfuse_blocks(xb, yb, wx, wy, wf, tn=tn,
                            compute_dtype=compute_dtype)
    return _from_blocks(ob, B, C, H, W)


# --------------------------------------------------------------------------
# Pure-JAX reference (NCHW) for correctness checking
# --------------------------------------------------------------------------
def reference(x, y, wx, wy, wf):
    def conv1x1(t, w):
        return jnp.einsum('bchw,cd->bdhw', t, w)

    def dwt(t):
        a = t[:, :, 0::2, 0::2]; b = t[:, :, 0::2, 1::2]
        c = t[:, :, 1::2, 0::2]; d = t[:, :, 1::2, 1::2]
        return (0.5 * (a + b + c + d), 0.5 * (a + b - c - d),
                0.5 * (a - b + c - d), 0.5 * (a - b - c + d))

    x1 = conv1x1(x, wx)
    y1 = conv1x1(y, wy)
    llx, lhx, hlx, hhx = dwt(x1)
    lly, lhy, hly, hhy = dwt(y1)
    ll = llx
    lh = jnp.maximum(lhx, lhy)
    hl = jnp.maximum(hlx, hly)
    hh = jnp.maximum(hhx, hhy)
    ra = 0.5 * (ll + lh + hl + hh)
    rb = 0.5 * (ll + lh - hl - hh)
    rc = 0.5 * (ll - lh + hl - hh)
    rd = 0.5 * (ll - lh - hl + hh)
    B, Cr, Hh, Wh = ra.shape
    rec = jnp.zeros((B, Cr, Hh * 2, Wh * 2), x.dtype)
    rec = rec.at[:, :, 0::2, 0::2].set(ra).at[:, :, 0::2, 1::2].set(rb)
    rec = rec.at[:, :, 1::2, 0::2].set(rc).at[:, :, 1::2, 1::2].set(rd)
    return conv1x1(rec, wf) + x


if __name__ == "__main__":
    B, C, H, W = 2, 16, 16, 16
    reduction = 4
    Cr = C // reduction

    key = jax.random.PRNGKey(0)
    kx, ky, kwx, kwy, kwf = jax.random.split(key, 5)
    x = jax.random.normal(kx, (B, C, H, W), jnp.float32)
    y = jax.random.normal(ky, (B, C, H, W), jnp.float32)
    # nn.Conv2d(C, Cr, 1, bias=False).weight is (Cr, C, 1, 1); we store the
    # transposed (C, Cr) matrix used by the 1x1-conv matmul.
    wx = 0.1 * jax.random.normal(kwx, (C, Cr), jnp.float32)
    wy = 0.1 * jax.random.normal(kwy, (C, Cr), jnp.float32)
    wf = 0.1 * jax.random.normal(kwf, (Cr, C), jnp.float32)

    fused = jax.jit(lambda a, b, w1, w2, w3: dwtconvfuse(a, b, w1, w2, w3))
    out = jax.block_until_ready(fused(x, y, wx, wy, wf))
    ref = reference(x, y, wx, wy, wf)
    assert out.shape == (B, C, H, W)
    err = float(jnp.max(jnp.abs(out - ref)))
    assert err < 1e-4, err
    print("KERNEL_OK")
</pallas_src>

<mosaic_0001>
module attributes {stable_mosaic.version = 11 : i64} {
  func.func @kernel(%arg0: i32, %arg1: memref<4x64x16xf32, #tpu.memory_space<vmem>>, %arg2: memref<4x64x16xf32, #tpu.memory_space<vmem>>, %arg3: memref<16x4xf32, #tpu.memory_space<vmem>>, %arg4: memref<16x4xf32, #tpu.memory_space<vmem>>, %arg5: memref<4x16xf32, #tpu.memory_space<vmem>>, %arg6: memref<4x64x16xf32, #tpu.memory_space<vmem>>) attributes {dimension_semantics = [#tpu.dimension_semantics<parallel>], iteration_bounds = array<i64: 2>, scalar_prefetch = 0 : i64, scratch_operands = 0 : i64, tpu.core_type = #tpu.core_type<tc>, window_params = [{transform_indices = @transform_0, window_bounds = array<i64: 4, 64, 16>}, {transform_indices = @transform_1, window_bounds = array<i64: 4, 64, 16>}, {pipeline_mode = #tpu.pipeline_mode<synchronous>, transform_indices = @transform_2, window_bounds = array<i64: 16, 4>}, {pipeline_mode = #tpu.pipeline_mode<synchronous>, transform_indices = @transform_3, window_bounds = array<i64: 16, 4>}, {pipeline_mode = #tpu.pipeline_mode<synchronous>, transform_indices = @transform_4, window_bounds = array<i64: 4, 16>}, {transform_indices = @transform_5, window_bounds = array<i64: 4, 64, 16>}]} {
    %c0 = arith.constant 0 : index
    %c0_0 = arith.constant 0 : index
    %c0_1 = arith.constant 0 : index
    %0 = vector.load %arg1[%c0, %c0_0, %c0_1] : memref<4x64x16xf32, #tpu.memory_space<vmem>>, vector<4x64x16xf32>
    %1 = vector.shape_cast %0 : vector<4x64x16xf32> to vector<256x16xf32>
    %c0_2 = arith.constant 0 : index
    %c0_3 = arith.constant 0 : index
    %2 = vector.load %arg3[%c0_2, %c0_3] : memref<16x4xf32, #tpu.memory_space<vmem>>, vector<16x4xf32>
    %cst = arith.constant dense<0.000000e+00> : vector<256x4xf32>
    %3 = tpu.matmul %1, %2, %cst {dimension_numbers = #tpu.dot_dimension_numbers<[1], [0], [0], [1], [0, 0, 1, 1], [], []>} : vector<256x16xf32>, vector<16x4xf32>, vector<256x4xf32> -> vector<256x4xf32>
    %4 = vector.shape_cast %3 : vector<256x4xf32> to vector<4x64x4xf32>
    %5 = vector.extract_strided_slice %4 {offsets = [0, 0, 0], sizes = [1, 64, 4], strides = [1, 1, 1]} : vector<4x64x4xf32> to vector<1x64x4xf32>
    %6 = vector.shape_cast %5 : vector<1x64x4xf32> to vector<64x4xf32>
    %7 = vector.extract_strided_slice %4 {offsets = [1, 0, 0], sizes = [1, 64, 4], strides = [1, 1, 1]} : vector<4x64x4xf32> to vector<1x64x4xf32>
    %8 = vector.shape_cast %7 : vector<1x64x4xf32> to vector<64x4xf32>
    %9 = arith.addf %6, %8 : vector<64x4xf32>
    %10 = vector.extract_strided_slice %4 {offsets = [0, 0, 0], sizes = [1, 64, 4], strides = [1, 1, 1]} : vector<4x64x4xf32> to vector<1x64x4xf32>
    %11 = vector.shape_cast %10 : vector<1x64x4xf32> to vector<64x4xf32>
    %12 = vector.extract_strided_slice %4 {offsets = [1, 0, 0], sizes = [1, 64, 4], strides = [1, 1, 1]} : vector<4x64x4xf32> to vector<1x64x4xf32>
    %13 = vector.shape_cast %12 : vector<1x64x4xf32> to vector<64x4xf32>
    %14 = arith.subf %11, %13 : vector<64x4xf32>
    %15 = vector.extract_strided_slice %4 {offsets = [2, 0, 0], sizes = [1, 64, 4], strides = [1, 1, 1]} : vector<4x64x4xf32> to vector<1x64x4xf32>
    %16 = vector.shape_cast %15 : vector<1x64x4xf32> to vector<64x4xf32>
    %17 = vector.extract_strided_slice %4 {offsets = [3, 0, 0], sizes = [1, 64, 4], strides = [1, 1, 1]} : vector<4x64x4xf32> to vector<1x64x4xf32>
    %18 = vector.shape_cast %17 : vector<1x64x4xf32> to vector<64x4xf32>
    %19 = arith.addf %16, %18 : vector<64x4xf32>
    %20 = vector.extract_strided_slice %4 {offsets = [2, 0, 0], sizes = [1, 64, 4], strides = [1, 1, 1]} : vector<4x64x4xf32> to vector<1x64x4xf32>
    %21 = vector.shape_cast %20 : vector<1x64x4xf32> to vector<64x4xf32>
    %22 = vector.extract_strided_slice %4 {offsets = [3, 0, 0], sizes = [1, 64, 4], strides = [1, 1, 1]} : vector<4x64x4xf32> to vector<1x64x4xf32>
    %23 = vector.shape_cast %22 : vector<1x64x4xf32> to vector<64x4xf32>
    %24 = arith.subf %21, %23 : vector<64x4xf32>
    %25 = arith.addf %9, %19 : vector<64x4xf32>
    %26 = arith.subf %9, %19 : vector<64x4xf32>
    %27 = arith.addf %14, %24 : vector<64x4xf32>
    %28 = arith.subf %14, %24 : vector<64x4xf32>
    %c0_4 = arith.constant 0 : index
    %c0_5 = arith.constant 0 : index
    %c0_6 = arith.constant 0 : index
    %29 = vector.load %arg2[%c0_4, %c0_5, %c0_6] : memref<4x64x16xf32, #tpu.memory_space<vmem>>, vector<4x64x16xf32>
    %30 = vector.shape_cast %29 : vector<4x64x16xf32> to vector<256x16xf32>
    %c0_7 = arith.constant 0 : index
    %c0_8 = arith.constant 0 : index
    %31 = vector.load %arg4[%c0_7, %c0_8] : memref<16x4xf32, #tpu.memory_space<vmem>>, vector<16x4xf32>
    %cst_9 = arith.constant dense<0.000000e+00> : vector<256x4xf32>
    %32 = tpu.matmul %30, %31, %cst_9 {dimension_numbers = #tpu.dot_dimension_numbers<[1], [0], [0], [1], [0, 0, 1, 1], [], []>} : vector<256x16xf32>, vector<16x4xf32>, vector<256x4xf32> -> vector<256x4xf32>
    %33 = vector.shape_cast %32 : vector<256x4xf32> to vector<4x64x4xf32>
    %34 = vector.extract_strided_slice %33 {offsets = [0, 0, 0], sizes = [1, 64, 4], strides = [1, 1, 1]} : vector<4x64x4xf32> to vector<1x64x4xf32>
    %35 = vector.shape_cast %34 : vector<1x64x4xf32> to vector<64x4xf32>
    %36 = vector.extract_strided_slice %33 {offsets = [1, 0, 0], sizes = [1, 64, 4], strides = [1, 1, 1]} : vector<4x64x4xf32> to vector<1x64x4xf32>
    %37 = vector.shape_cast %36 : vector<1x64x4xf32> to vector<64x4xf32>
    %38 = arith.addf %35, %37 : vector<64x4xf32>
    %39 = vector.extract_strided_slice %33 {offsets = [0, 0, 0], sizes = [1, 64, 4], strides = [1, 1, 1]} : vector<4x64x4xf32> to vector<1x64x4xf32>
    %40 = vector.shape_cast %39 : vector<1x64x4xf32> to vector<64x4xf32>
    %41 = vector.extract_strided_slice %33 {offsets = [1, 0, 0], sizes = [1, 64, 4], strides = [1, 1, 1]} : vector<4x64x4xf32> to vector<1x64x4xf32>
    %42 = vector.shape_cast %41 : vector<1x64x4xf32> to vector<64x4xf32>
    %43 = arith.subf %40, %42 : vector<64x4xf32>
    %44 = vector.extract_strided_slice %33 {offsets = [2, 0, 0], sizes = [1, 64, 4], strides = [1, 1, 1]} : vector<4x64x4xf32> to vector<1x64x4xf32>
    %45 = vector.shape_cast %44 : vector<1x64x4xf32> to vector<64x4xf32>
    %46 = vector.extract_strided_slice %33 {offsets = [3, 0, 0], sizes = [1, 64, 4], strides = [1, 1, 1]} : vector<4x64x4xf32> to vector<1x64x4xf32>
    %47 = vector.shape_cast %46 : vector<1x64x4xf32> to vector<64x4xf32>
    %48 = arith.addf %45, %47 : vector<64x4xf32>
    %49 = vector.extract_strided_slice %33 {offsets = [2, 0, 0], sizes = [1, 64, 4], strides = [1, 1, 1]} : vector<4x64x4xf32> to vector<1x64x4xf32>
    %50 = vector.shape_cast %49 : vector<1x64x4xf32> to vector<64x4xf32>
    %51 = vector.extract_strided_slice %33 {offsets = [3, 0, 0], sizes = [1, 64, 4], strides = [1, 1, 1]} : vector<4x64x4xf32> to vector<1x64x4xf32>
    %52 = vector.shape_cast %51 : vector<1x64x4xf32> to vector<64x4xf32>
    %53 = arith.subf %50, %52 : vector<64x4xf32>
    %54 = arith.subf %38, %48 : vector<64x4xf32>
    %55 = arith.maximumf %26, %54 : vector<64x4xf32>
    %56 = arith.addf %43, %53 : vector<64x4xf32>
    %57 = arith.maximumf %27, %56 : vector<64x4xf32>
    %58 = arith.subf %43, %53 : vector<64x4xf32>
    %59 = arith.maximumf %28, %58 : vector<64x4xf32>
    %60 = arith.addf %25, %55 : vector<64x4xf32>
    %61 = arith.subf %25, %55 : vector<64x4xf32>
    %62 = arith.addf %57, %59 : vector<64x4xf32>
    %63 = arith.subf %57, %59 : vector<64x4xf32>
    %64 = arith.addf %60, %62 : vector<64x4xf32>
    %65 = arith.subf %60, %62 : vector<64x4xf32>
    %66 = arith.addf %61, %63 : vector<64x4xf32>
    %67 = arith.subf %61, %63 : vector<64x4xf32>
    %c0_10 = arith.constant 0 : index
    %c0_11 = arith.constant 0 : index
    %68 = vector.load %arg5[%c0_10, %c0_11] : memref<4x16xf32, #tpu.memory_space<vmem>>, vector<4x16xf32>
    %cst_12 = arith.constant dense<0.000000e+00> : vector<64x16xf32>
    %69 = tpu.matmul %64, %68, %cst_12 {dimension_numbers = #tpu.dot_dimension_numbers<[1], [0], [0], [1], [0, 0, 1, 1], [], []>} : vector<64x4xf32>, vector<4x16xf32>, vector<64x16xf32> -> vector<64x16xf32>
    %c0_13 = arith.constant 0 : index
    %c0_14 = arith.constant 0 : index
    %c0_15 = arith.constant 0 : index
    %70 = vector.load %arg1[%c0_13, %c0_14, %c0_15] : memref<4x64x16xf32, #tpu.memory_space<vmem>>, vector<1x64x16xf32>
    %71 = vector.shape_cast %70 : vector<1x64x16xf32> to vector<64x16xf32>
    %72 = arith.addf %69, %71 : vector<64x16xf32>
    %c0_16 = arith.constant 0 : index
    %c0_17 = arith.constant 0 : index
    %c0_18 = arith.constant 0 : index
    %73 = vector.load %arg6[%c0_16, %c0_17, %c0_18] : memref<4x64x16xf32, #tpu.memory_space<vmem>>, vector<1x64x16xf32>
    %74 = vector.shape_cast %73 : vector<1x64x16xf32> to vector<64x16xf32>
    %75 = vector.shape_cast %72 : vector<64x16xf32> to vector<1x64x16xf32>
    tpu.vector_store %arg6[%c0_16, %c0_17, %c0_18], %75 {strides = array<i32>} : memref<4x64x16xf32, #tpu.memory_space<vmem>>, vector<1x64x16xf32>,
    %c0_19 = arith.constant 0 : index
    %c0_20 = arith.constant 0 : index
    %76 = vector.load %arg5[%c0_19, %c0_20] : memref<4x16xf32, #tpu.memory_space<vmem>>, vector<4x16xf32>
    %cst_21 = arith.constant dense<0.000000e+00> : vector<64x16xf32>
    %77 = tpu.matmul %65, %76, %cst_21 {dimension_numbers = #tpu.dot_dimension_numbers<[1], [0], [0], [1], [0, 0, 1, 1], [], []>} : vector<64x4xf32>, vector<4x16xf32>, vector<64x16xf32> -> vector<64x16xf32>
    %c1 = arith.constant 1 : index
    %c0_22 = arith.constant 0 : index
    %c0_23 = arith.constant 0 : index
    %78 = vector.load %arg1[%c1, %c0_22, %c0_23] : memref<4x64x16xf32, #tpu.memory_space<vmem>>, vector<1x64x16xf32>
    %79 = vector.shape_cast %78 : vector<1x64x16xf32> to vector<64x16xf32>
    %80 = arith.addf %77, %79 : vector<64x16xf32>
    %c1_24 = arith.constant 1 : index
    %c0_25 = arith.constant 0 : index
    %c0_26 = arith.constant 0 : index
    %81 = vector.load %arg6[%c1_24, %c0_25, %c0_26] : memref<4x64x16xf32, #tpu.memory_space<vmem>>, vector<1x64x16xf32>
    %82 = vector.shape_cast %81 : vector<1x64x16xf32> to vector<64x16xf32>
    %83 = vector.shape_cast %80 : vector<64x16xf32> to vector<1x64x16xf32>
    tpu.vector_store %arg6[%c1_24, %c0_25, %c0_26], %83 {strides = array<i32>} : memref<4x64x16xf32, #tpu.memory_space<vmem>>, vector<1x64x16xf32>,
    %c0_27 = arith.constant 0 : index
    %c0_28 = arith.constant 0 : index
    %84 = vector.load %arg5[%c0_27, %c0_28] : memref<4x16xf32, #tpu.memory_space<vmem>>, vector<4x16xf32>
    %cst_29 = arith.constant dense<0.000000e+00> : vector<64x16xf32>
    %85 = tpu.matmul %66, %84, %cst_29 {dimension_numbers = #tpu.dot_dimension_numbers<[1], [0], [0], [1], [0, 0, 1, 1], [], []>} : vector<64x4xf32>, vector<4x16xf32>, vector<64x16xf32> -> vector<64x16xf32>
    %c2 = arith.constant 2 : index
    %c0_30 = arith.constant 0 : index
    %c0_31 = arith.constant 0 : index
    %86 = vector.load %arg1[%c2, %c0_30, %c0_31] : memref<4x64x16xf32, #tpu.memory_space<vmem>>, vector<1x64x16xf32>
    %87 = vector.shape_cast %86 : vector<1x64x16xf32> to vector<64x16xf32>
    %88 = arith.addf %85, %87 : vector<64x16xf32>
    %c2_32 = arith.constant 2 : index
    %c0_33 = arith.constant 0 : index
    %c0_34 = arith.constant 0 : index
    %89 = vector.load %arg6[%c2_32, %c0_33, %c0_34] : memref<4x64x16xf32, #tpu.memory_space<vmem>>, vector<1x64x16xf32>
    %90 = vector.shape_cast %89 : vector<1x64x16xf32> to vector<64x16xf32>
    %91 = vector.shape_cast %88 : vector<64x16xf32> to vector<1x64x16xf32>
    tpu.vector_store %arg6[%c2_32, %c0_33, %c0_34], %91 {strides = array<i32>} : memref<4x64x16xf32, #tpu.memory_space<vmem>>, vector<1x64x16xf32>,
    %c0_35 = arith.constant 0 : index
    %c0_36 = arith.constant 0 : index
    %92 = vector.load %arg5[%c0_35, %c0_36] : memref<4x16xf32, #tpu.memory_space<vmem>>, vector<4x16xf32>
    %cst_37 = arith.constant dense<0.000000e+00> : vector<64x16xf32>
    %93 = tpu.matmul %67, %92, %cst_37 {dimension_numbers = #tpu.dot_dimension_numbers<[1], [0], [0], [1], [0, 0, 1, 1], [], []>} : vector<64x4xf32>, vector<4x16xf32>, vector<64x16xf32> -> vector<64x16xf32>
    %c3 = arith.constant 3 : index
    %c0_38 = arith.constant 0 : index
    %c0_39 = arith.constant 0 : index
    %94 = vector.load %arg1[%c3, %c0_38, %c0_39] : memref<4x64x16xf32, #tpu.memory_space<vmem>>, vector<1x64x16xf32>
    %95 = vector.shape_cast %94 : vector<1x64x16xf32> to vector<64x16xf32>
    %96 = arith.addf %93, %95 : vector<64x16xf32>
    %c3_40 = arith.constant 3 : index
    %c0_41 = arith.constant 0 : index
    %c0_42 = arith.constant 0 : index
    %97 = vector.load %arg6[%c3_40, %c0_41, %c0_42] : memref<4x64x16xf32, #tpu.memory_space<vmem>>, vector<1x64x16xf32>
    %98 = vector.shape_cast %97 : vector<1x64x16xf32> to vector<64x16xf32>
    %99 = vector.shape_cast %96 : vector<64x16xf32> to vector<1x64x16xf32>
    tpu.vector_store %arg6[%c3_40, %c0_41, %c0_42], %99 {strides = array<i32>} : memref<4x64x16xf32, #tpu.memory_space<vmem>>, vector<1x64x16xf32>,
    return
  }
  func.func @transform_0(%arg0: i32) -> (i32, i32, i32) {
    %c0_i32 = arith.constant 0 : i32
    %c0_i32_0 = arith.constant 0 : i32
    %c0_i32_1 = arith.constant 0 : i32
    return %c0_i32, %arg0, %c0_i32_0 : i32, i32, i32
  }
  func.func @transform_1(%arg0: i32) -> (i32, i32, i32) {
    %c0_i32 = arith.constant 0 : i32
    %c0_i32_0 = arith.constant 0 : i32
    %c0_i32_1 = arith.constant 0 : i32
    return %c0_i32, %arg0, %c0_i32_0 : i32, i32, i32
  }
  func.func @transform_2(%arg0: i32) -> (i32, i32) {
    %c0_i32 = arith.constant 0 : i32
    %c0_i32_0 = arith.constant 0 : i32
    %c0_i32_1 = arith.constant 0 : i32
    return %c0_i32, %c0_i32_0 : i32, i32
  }
  func.func @transform_3(%arg0: i32) -> (i32, i32) {
    %c0_i32 = arith.constant 0 : i32
    %c0_i32_0 = arith.constant 0 : i32
    %c0_i32_1 = arith.constant 0 : i32
    return %c0_i32, %c0_i32_0 : i32, i32
  }
  func.func @transform_4(%arg0: i32) -> (i32, i32) {
    %c0_i32 = arith.constant 0 : i32
    %c0_i32_0 = arith.constant 0 : i32
    %c0_i32_1 = arith.constant 0 : i32
    return %c0_i32, %c0_i32_0 : i32, i32
  }
  func.func @transform_5(%arg0: i32) -> (i32, i32, i32) {
    %c0_i32 = arith.constant 0 : i32
    %c0_i32_0 = arith.constant 0 : i32
    %c0_i32_1 = arith.constant 0 : i32
    return %c0_i32, %arg0, %c0_i32_0 : i32, i32, i32
  }
}

</mosaic_0001>

<llo_original>
// kernel: _lambda_.1
$region0: #{_lambda_.1}
  #allocation0 [shape = 'u32[]', space=smem, size = 0x4, offset = 0x4, fixed_abs, tag = 'smem constant byte address 0x4 - core index']
  #allocation1 [shape = 'u32[144,128]{1,0:T(1,128)}', space=vmem, size = 0x12000, scoped, tag = 'internal scratch']
  %s0 = inlined_call_operand.vmem [shape: f32[4,128,16], index: 0, kind: input, shape index: {}, may-alias: {0,5}]
  %s1 = inlined_call_operand.vmem [shape: f32[4,128,16], index: 1, kind: input, shape index: {}]
  %s2 = inlined_call_operand.vmem [shape: f32[16,4], index: 2, kind: input, shape index: {}]
  %s3 = inlined_call_operand.vmem [shape: f32[16,4], index: 3, kind: input, shape index: {}]
  %s4 = inlined_call_operand.vmem [shape: f32[4,16], index: 4, kind: input, shape index: {}]
  %s5 = inlined_call_operand.vmem [shape: f32[4,128,16], index: 5, kind: output, shape index: {}, may-alias: {0,5}]
  %s6 = sld [smem:[#allocation0]]
  $region163: #{_lambda_.1} parent=0
    _
  %s8 = ssub.s32 1, %s6
  %s9 = scalar_select 0, %s8, %s6
  $region1: #{_lambda_.1} parent=0
    #allocation2 [shape = 'u8[262144]{0}', space=vmem, size = 0x40000, scoped, tag = 'input window, operand 0']
    #allocation3 [shape = 'u8[262144]{0}', space=vmem, size = 0x40000, scoped, tag = 'input window, operand 1']
    #allocation4 [shape = 'u8[262144]{0}', space=vmem, size = 0x40000, scoped, tag = 'output window, operand 0']
    loop: start=0, step=1, limit=4
    $region2: #{_lambda_.1} parent=1 // loop_pre_header
      _
    $region3: #{_lambda_.1} parent=1 // loop_header
      %s11 = sphi 0, %s15
      %p12 = scmp.ge.s32.totalorder %s11, 4
      %s21 = sphi 0, %s23
      %s24 = sphi 0, %s21
      %s25 = sphi 0, %s24
      %s41 = sphi 0, %s25
      %s47 = sphi 0, %s49
      %s50 = sphi 0, %s47
      %s51 = sphi 0, %s50
      %s67 = sphi 0, %s51
      %s71 = sphi 0, %s71
      %s73 = sphi 0, %s71
      %s74 = sphi 0, %s73
      %s88 = sphi 0, %s74
      %s92 = sphi 0, %s92
      %s94 = sphi 0, %s92
      %s95 = sphi 0, %s94
      %s109 = sphi 0, %s95
      %s113 = sphi 0, %s113
      %s115 = sphi 0, %s113
      %s116 = sphi 0, %s115
      %s130 = sphi 0, %s116
      %s136 = sphi 0, %s138
      %s139 = sphi 0, %s136
      %s140 = sphi 0, %s139
      %s156 = sphi 0, %s140
    $region4: #{_lambda_.1} parent=1 // loop_header_branch
      %14 = sbr.rel (%p12) target = $region8
    $region5: #{_lambda_.1} parent=1 // loop_body
      %s16 = ssub.s32 %s11, 1
      %s17 = ssub.s32 %s11, 2
      %s18 = sadd.s32 %s11, 1
      %s19 = ssub.s32 %s11, %s18
      %p20 = scmp.eq.s32.totalorder %s19, 0
      %s22 = sadd.s32 %s21, 1
      %s23 = scalar_select %p20, %s21, %s22
      %p26 = pneg %p20
      %p27 = scmp.eq.s32.totalorder %s11, 1
      %p28 = por %p26, %p27
      %p29 = scmp.ne.s32.totalorder %s21, %s24
      %p30 = scmp.eq.s32.totalorder %s11, 0
      %p31 = por %p29, %p30
      %p32 = scmp.ne.s32.totalorder %s21, %s24
      %p33 = scmp.eq.s32.totalorder %s16, 1
      %p34 = por %p32, %p33
      %p35 = scmp.ne.s32.totalorder %s24, %s25
      %p36 = scmp.eq.s32.totalorder %s16, 0
      %p37 = por %p35, %p36
      %p38 = scmp.ne.s32.totalorder %s24, %s25
      %p39 = scmp.eq.s32.totalorder %s17, 1
      %p40 = por %p38, %p39
      %p42 = scmp.ne.s32.totalorder %s25, %s41
      %p43 = scmp.eq.s32.totalorder %s17, 0
      %p44 = por %p42, %p43
      %s45 = ssub.s32 %s11, %s18
      %p46 = scmp.eq.s32.totalorder %s45, 0
      %s48 = sadd.s32 %s47, 1
      %s49 = scalar_select %p46, %s47, %s48
      %p52 = pneg %p46
      %p53 = scmp.eq.s32.totalorder %s11, 1
      %p54 = por %p52, %p53
      %p55 = scmp.ne.s32.totalorder %s47, %s50
      %p56 = scmp.eq.s32.totalorder %s11, 0
      %p57 = por %p55, %p56
      %p58 = scmp.ne.s32.totalorder %s47, %s50
      %p59 = scmp.eq.s32.totalorder %s16, 1
      %p60 = por %p58, %p59
      %p61 = scmp.ne.s32.totalorder %s50, %s51
      %p62 = scmp.eq.s32.totalorder %s16, 0
      %p63 = por %p61, %p62
      %p64 = scmp.ne.s32.totalorder %s50, %s51
      %p65 = scmp.eq.s32.totalorder %s17, 1
      %p66 = por %p64, %p65
      %p68 = scmp.ne.s32.totalorder %s51, %s67
      %p69 = scmp.eq.s32.totalorder %s17, 0
      %p70 = por %p68, %p69
      %s72 = sadd.s32 %s71, 1
      %p75 = scmp.eq.s32.totalorder %s11, 1
      %p76 = scmp.ne.s32.totalorder %s71, %s73
      %p77 = scmp.eq.s32.totalorder %s11, 0
      %p78 = por %p76, %p77
      %p79 = scmp.ne.s32.totalorder %s71, %s73
      %p80 = scmp.eq.s32.totalorder %s16, 1
      %p81 = por %p79, %p80
      %p82 = scmp.ne.s32.totalorder %s73, %s74
      %p83 = scmp.eq.s32.totalorder %s16, 0
      %p84 = por %p82, %p83
      %p85 = scmp.ne.s32.totalorder %s73, %s74
      %p86 = scmp.eq.s32.totalorder %s17, 1
      %p87 = por %p85, %p86
      %p89 = scmp.ne.s32.totalorder %s74, %s88
      %p90 = scmp.eq.s32.totalorder %s17, 0
      %p91 = por %p89, %p90
      %s93 = sadd.s32 %s92, 1
      %p96 = scmp.eq.s32.totalorder %s11, 1
      %p97 = scmp.ne.s32.totalorder %s92, %s94
      %p98 = scmp.eq.s32.totalorder %s11, 0
      %p99 = por %p97, %p98
      %p100 = scmp.ne.s32.totalorder %s92, %s94
      %p101 = scmp.eq.s32.totalorder %s16, 1
      %p102 = por %p100, %p101
      %p103 = scmp.ne.s32.totalorder %s94, %s95
      %p104 = scmp.eq.s32.totalorder %s16, 0
      %p105 = por %p103, %p104
      %p106 = scmp.ne.s32.totalorder %s94, %s95
      %p107 = scmp.eq.s32.totalorder %s17, 1
      %p108 = por %p106, %p107
      %p110 = scmp.ne.s32.totalorder %s95, %s109
      %p111 = scmp.eq.s32.totalorder %s17, 0
      %p112 = por %p110, %p111
      %s114 = sadd.s32 %s113, 1
      %p117 = scmp.eq.s32.totalorder %s11, 1
      %p118 = scmp.ne.s32.totalorder %s113, %s115
      %p119 = scmp.eq.s32.totalorder %s11, 0
      %p120 = por %p118, %p119
      %p121 = scmp.ne.s32.totalorder %s113, %s115
      %p122 = scmp.eq.s32.totalorder %s16, 1
      %p123 = por %p121, %p122
      %p124 = scmp.ne.s32.totalorder %s115, %s116
      %p125 = scmp.eq.s32.totalorder %s16, 0
      %p126 = por %p124, %p125
      %p127 = scmp.ne.s32.totalorder %s115, %s116
      %p128 = scmp.eq.s32.totalorder %s17, 1
      %p129 = por %p127, %p128
      %p131 = scmp.ne.s32.totalorder %s116, %s130
      %p132 = scmp.eq.s32.totalorder %s17, 0
      %p133 = por %p131, %p132
      %s134 = ssub.s32 %s11, %s18
      %p135 = scmp.eq.s32.totalorder %s134, 0
      %s137 = sadd.s32 %s136, 1
      %s138 = scalar_select %p135, %s136, %s137
      %p141 = pneg %p135
      %p142 = scmp.eq.s32.totalorder %s11, 1
      %p143 = por %p141, %p142
      %p144 = scmp.ne.s32.totalorder %s136, %s139
      %p145 = scmp.eq.s32.totalorder %s11, 0
      %p146 = por %p144, %p145
      %p147 = scmp.ne.s32.totalorder %s136, %s139
      %p148 = scmp.eq.s32.totalorder %s16, 1
      %p149 = por %p147, %p148
      %p150 = scmp.ne.s32.totalorder %s139, %s140
      %p151 = scmp.eq.s32.totalorder %s16, 0
      %p152 = por %p150, %p151
      %p153 = scmp.ne.s32.totalorder %s139, %s140
      %p154 = scmp.eq.s32.totalorder %s17, 1
      %p155 = por %p153, %p154
      %p157 = scmp.ne.s32.totalorder %s140, %s156
      %p158 = scmp.eq.s32.totalorder %s17, 0
      %p159 = por %p157, %p158
      %p160 = scmp.le.s32.totalorder 1, %s11
      %p161 = scmp.lt.s32.totalorder %s11, 3
      %p162 = pnand %p160, %p161
      %p163 = pneg %p162
      // Predicated region
      $region9: #{_lambda_.1} parent=5 // pred_check
        _
      $region10: #{_lambda_.1} parent=5 // pred_check_branch
        %165 = sbr.rel (%p162) target = $region12
      $region11: #{_lambda_.1} parent=5 // pred_region
        %s166 = ssub.s32 %s11, 1
        // Predicated region
        $region13: #{_lambda_.1} parent=11 // pred_check
          %p167 = pneg %p84
        $region14: #{_lambda_.1} parent=11 // pred_check_branch
          %169 = sbr.rel (%p167) target = $region16
        $region15: #{_lambda_.1} parent=11 // pred_region
          _
        $region16: #{_lambda_.1} parent=11 // pred_fallthru
          _
        // Predicated region
        $region17: #{_lambda_.1} parent=11 // pred_check
          %p170 = pneg %p105
        $region18: #{_lambda_.1} parent=11 // pred_check_branch
          %172 = sbr.rel (%p170) target = $region20
        $region19: #{_lambda_.1} parent=11 // pred_region
          _
        $region20: #{_lambda_.1} parent=11 // pred_fallthru
          _
        // Predicated region
        $region21: #{_lambda_.1} parent=11 // pred_check
          %p173 = pneg %p126
        $region22: #{_lambda_.1} parent=11 // pred_check_branch
          %175 = sbr.rel (%p173) target = $region24
        $region23: #{_lambda_.1} parent=11 // pred_region
          _
        $region24: #{_lambda_.1} parent=11 // pred_fallthru
          _
      $region12: #{_lambda_.1} parent=5 // pred_fallthru
        _
      %p176 = scmp.lt.s32.totalorder %s11, 2
      // Predicated region
      $region25: #{_lambda_.1} parent=5 // pred_check
        %p177 = pneg %p176
      $region26: #{_lambda_.1} parent=5 // pred_check_branch
        %179 = sbr.rel (%p177) target = $region28
      $region27: #{_lambda_.1} parent=5 // pred_region
        // Predicated region
        $region29: #{_lambda_.1} parent=27 // pred_check
          %p180 = pneg %p31
        $region30: #{_lambda_.1} parent=27 // pred_check_branch
          %182 = sbr.rel (%p180) target = $region32
        $region31: #{_lambda_.1} parent=27 // pred_region
          %s183 = sand.u32 %s21, 1
          %s184 = sand.u32 %s21, 1
          %s185 = smul.addr %s184, 256
          %s186 = scalar_lea.vmem [#allocation2], %s185
          %s187 = smul.u32 8, %s11
          %s188 = smul.addr %s187, 8
          %s189 = scalar_lea.vmem %s0, %s188
          // Predicated region
          $region33: #{_lambda_.1} parent=31 // pred_check
            _
          $region34: #{_lambda_.1} parent=31 // pred_check_branch
            %191 = sbr.rel (0) target = $region36
          $region35: #{_lambda_.1} parent=31 // pred_region
            // Predicated region
            $region37: #{_lambda_.1} parent=35 // pred_check
              _
            $region38: #{_lambda_.1} parent=35 // pred_check_branch
              %193 = sbr.rel (0) target = $region40
            $region39: #{_lambda_.1} parent=35 // pred_region
              // Predicated region
              $region52: #{_lambda_.1} parent=39 // pred_check
                _
              $region53: #{_lambda_.1} parent=39 // pred_check_branch
                %270 = sbr.rel (0) target = $region55
              $region54: #{_lambda_.1} parent=39 // pred_region
                loop: start=0, step=1, limit=1
                $region56: #{_lambda_.1} parent=54 // loop_pre_header
                  _
                $region57: #{_lambda_.1} parent=54 // loop_header
                  %s272 = sphi 0, %s276
                  %p273 = scmp.ge.s32.totalorder %s272, 1
                  %s277 = sphi %s189, %s189
                  %s278 = sphi %s186, %s186
                $region58: #{_lambda_.1} parent=54 // loop_header_branch
                  %275 = sbr.rel (%p273) target = $region62
                $region59: #{_lambda_.1} parent=54 // loop_body
                  %v279 = vld [vmem:[%s277] sm:$0xff]
                  %280 = vst [vmem:[%s278] sm:$0xff] %v279
                  %v281 = vld [vmem:[%s277 + $0x8] sm:$0xff]
                  %282 = vst [vmem:[%s278 + $0x8] sm:$0xff] %v281
                  %v283 = vld [vmem:[%s277 + $0x10] sm:$0xff]
                  %284 = vst [vmem:[%s278 + $0x10] sm:$0xff] %v283
                  %v285 = vld [vmem:[%s277 + $0x18] sm:$0xff]
                  %286 = vst [vmem:[%s278 + $0x18] sm:$0xff] %v285
                  %v287 = vld [vmem:[%s277 + $0x20] sm:$0xff]
                  %288 = vst [vmem:[%s278 + $0x20] sm:$0xff] %v287
                  %v289 = vld [vmem:[%s277 + $0x28] sm:$0xff]
                  %290 = vst [vmem:[%s278 + $0x28] sm:$0xff] %v289
                  %v291 = vld [vmem:[%s277 + $0x30] sm:$0xff]
                  %292 = vst [vmem:[%s278 + $0x30] sm:$0xff] %v291
                  %v293 = vld [vmem:[%s277 + $0x38] sm:$0xff]
                  %294 = vst [vmem:[%s278 + $0x38] sm:$0xff] %v293
                  %v295 = vld [vmem:[%s277 + $0x80] sm:$0xff]
                  %296 = vst [vmem:[%s278 + $0x40] sm:$0xff] %v295
                  %v297 = vld [vmem:[%s277 + $0x88] sm:$0xff]
                  %298 = vst [vmem:[%s278 + $0x48] sm:$0xff] %v297
                  %v299 = vld [vmem:[%s277 + $0x90] sm:$0xff]
                  %300 = vst [vmem:[%s278 + $0x50] sm:$0xff] %v299
                  %v301 = vld [vmem:[%s277 + $0x98] sm:$0xff]
                  %302 = vst [vmem:[%s278 + $0x58] sm:$0xff] %v301
                  %v303 = vld [vmem:[%s277 + $0xa0] sm:$0xff]
                  %304 = vst [vmem:[%s278 + $0x60] sm:$0xff] %v303
                  %v305 = vld [vmem:[%s277 + $0xa8] sm:$0xff]
                  %306 = vst [vmem:[%s278 + $0x68] sm:$0xff] %v305
                  %v307 = vld [vmem:[%s277 + $0xb0] sm:$0xff]
                  %308 = vst [vmem:[%s278 + $0x70] sm:$0xff] %v307
                  %v309 = vld [vmem:[%s277 + $0xb8] sm:$0xff]
                  %310 = vst [vmem:[%s278 + $0x78] sm:$0xff] %v309
                  %v311 = vld [vmem:[%s277 + $0x100] sm:$0xff]
                  %312 = vst [vmem:[%s278 + $0x80] sm:$0xff] %v311
                  %v313 = vld [vmem:[%s277 + $0x108] sm:$0xff]
                  %314 = vst [vmem:[%s278 + $0x88] sm:$0xff] %v313
                  %v315 = vld [vmem:[%s277 + $0x110] sm:$0xff]
                  %316 = vst [vmem:[%s278 + $0x90] sm:$0xff] %v315
                  %v317 = vld [vmem:[%s277 + $0x118] sm:$0xff]
                  %318 = vst [vmem:[%s278 + $0x98] sm:$0xff] %v317
                  %v319 = vld [vmem:[%s277 + $0x120] sm:$0xff]
                  %320 = vst [vmem:[%s278 + $0xa0] sm:$0xff] %v319
                  %v321 = vld [vmem:[%s277 + $0x128] sm:$0xff]
                  %322 = vst [vmem:[%s278 + $0xa8] sm:$0xff] %v321
                  %v323 = vld [vmem:[%s277 + $0x130] sm:$0xff]
                  %324 = vst [vmem:[%s278 + $0xb0] sm:$0xff] %v323
                  %v325 = vld [vmem:[%s277 + $0x138] sm:$0xff]
                  %326 = vst [vmem:[%s278 + $0xb8] sm:$0xff] %v325
                  %v327 = vld [vmem:[%s277 + $0x180] sm:$0xff]
                  %328 = vst [vmem:[%s278 + $0xc0] sm:$0xff] %v327
                  %v329 = vld [vmem:[%s277 + $0x188] sm:$0xff]
                  %330 = vst [vmem:[%s278 + $0xc8] sm:$0xff] %v329
                  %v331 = vld [vmem:[%s277 + $0x190] sm:$0xff]
                  %332 = vst [vmem:[%s278 + $0xd0] sm:$0xff] %v331
                  %v333 = vld [vmem:[%s277 + $0x198] sm:$0xff]
                  %334 = vst [vmem:[%s278 + $0xd8] sm:$0xff] %v333
                  %v335 = vld [vmem:[%s277 + $0x1a0] sm:$0xff]
                  %336 = vst [vmem:[%s278 + $0xe0] sm:$0xff] %v335
                  %v337 = vld [vmem:[%s277 + $0x1a8] sm:$0xff]
                  %338 = vst [vmem:[%s278 + $0xe8] sm:$0xff] %v337
                  %v339 = vld [vmem:[%s277 + $0x1b0] sm:$0xff]
                  %340 = vst [vmem:[%s278 + $0xf0] sm:$0xff] %v339
                  %v341 = vld [vmem:[%s277 + $0x1b8] sm:$0xff]
                  %342 = vst [vmem:[%s278 + $0xf8] sm:$0xff] %v341
                $region60: #{_lambda_.1} parent=54 // loop_footer
                  %s276 = sadd.s32 1, %s272
                $region61: #{_lambda_.1} parent=54 // loop_footer_branch
                  %271 = sbr.rel target = $region57
                $region62: #{_lambda_.1} parent=54 // loop_exit
                  _
              $region55: #{_lambda_.1} parent=39 // pred_fallthru
                _
              // Predicated region
              $region63: #{_lambda_.1} parent=39 // pred_check
                _
              $region64: #{_lambda_.1} parent=39 // pred_check_branch
                %344 = sbr.rel target = $region66
              $region65: #{_lambda_.1} parent=39 // pred_region
                _
              $region66: #{_lambda_.1} parent=39 // pred_fallthru
                _
            $region40: #{_lambda_.1} parent=35 // pred_fallthru
              _
            // Predicated region
            $region41: #{_lambda_.1} parent=35 // pred_check
              _
            $region42: #{_lambda_.1} parent=35 // pred_check_branch
              %195 = sbr.rel target = $region44
            $region43: #{_lambda_.1} parent=35 // pred_region
              loop: start=0, step=1, limit=1
              $region45: #{_lambda_.1} parent=43 // loop_pre_header
                _
              $region46: #{_lambda_.1} parent=43 // loop_header
                %s198 = sphi 0, %s202
                %p199 = scmp.ge.s32.totalorder %s198, 1
                %s203 = sphi %s189, %s189
                %s204 = sphi %s186, %s186
              $region47: #{_lambda_.1} parent=43 // loop_header_branch
                %201 = sbr.rel (%p199) target = $region51
              $region48: #{_lambda_.1} parent=43 // loop_body
                %v205 = vld [vmem:[%s203] sm:$0xff]
                %206 = vst [vmem:[%s204] sm:$0xff] %v205
                %v207 = vld [vmem:[%s203 + $0x8] sm:$0xff]
                %208 = vst [vmem:[%s204 + $0x8] sm:$0xff] %v207
                %v209 = vld [vmem:[%s203 + $0x10] sm:$0xff]
                %210 = vst [vmem:[%s204 + $0x10] sm:$0xff] %v209
                %v211 = vld [vmem:[%s203 + $0x18] sm:$0xff]
                %212 = vst [vmem:[%s204 + $0x18] sm:$0xff] %v211
                %v213 = vld [vmem:[%s203 + $0x20] sm:$0xff]
                %214 = vst [vmem:[%s204 + $0x20] sm:$0xff] %v213
                %v215 = vld [vmem:[%s203 + $0x28] sm:$0xff]
                %216 = vst [vmem:[%s204 + $0x28] sm:$0xff] %v215
                %v217 = vld [vmem:[%s203 + $0x30] sm:$0xff]
                %218 = vst [vmem:[%s204 + $0x30] sm:$0xff] %v217
                %v219 = vld [vmem:[%s203 + $0x38] sm:$0xff]
                %220 = vst [vmem:[%s204 + $0x38] sm:$0xff] %v219
                %v221 = vld [vmem:[%s203 + $0x80] sm:$0xff]
                %222 = vst [vmem:[%s204 + $0x40] sm:$0xff] %v221
                %v223 = vld [vmem:[%s203 + $0x88] sm:$0xff]
                %224 = vst [vmem:[%s204 + $0x48] sm:$0xff] %v223
                %v225 = vld [vmem:[%s203 + $0x90] sm:$0xff]
                %226 = vst [vmem:[%s204 + $0x50] sm:$0xff] %v225
                %v227 = vld [vmem:[%s203 + $0x98] sm:$0xff]
                %228 = vst [vmem:[%s204 + $0x58] sm:$0xff] %v227
                %v229 = vld [vmem:[%s203 + $0xa0] sm:$0xff]
                %230 = vst [vmem:[%s204 + $0x60] sm:$0xff] %v229
                %v231 = vld [vmem:[%s203 + $0xa8] sm:$0xff]
                %232 = vst [vmem:[%s204 + $0x68] sm:$0xff] %v231
                %v233 = vld [vmem:[%s203 + $0xb0] sm:$0xff]
                %234 = vst [vmem:[%s204 + $0x70] sm:$0xff] %v233
                %v235 = vld [vmem:[%s203 + $0xb8] sm:$0xff]
                %236 = vst [vmem:[%s204 + $0x78] sm:$0xff] %v235
                %v237 = vld [vmem:[%s203 + $0x100] sm:$0xff]
                %238 = vst [vmem:[%s204 + $0x80] sm:$0xff] %v237
                %v239 = vld [vmem:[%s203 + $0x108] sm:$0xff]
                %240 = vst [vmem:[%s204 + $0x88] sm:$0xff] %v239
                %v241 = vld [vmem:[%s203 + $0x110] sm:$0xff]
                %242 = vst [vmem:[%s204 + $0x90] sm:$0xff] %v241
                %v243 = vld [vmem:[%s203 + $0x118] sm:$0xff]
                %244 = vst [vmem:[%s204 + $0x98] sm:$0xff] %v243
                %v245 = vld [vmem:[%s203 + $0x120] sm:$0xff]
                %246 = vst [vmem:[%s204 + $0xa0] sm:$0xff] %v245
                %v247 = vld [vmem:[%s203 + $0x128] sm:$0xff]
                %248 = vst [vmem:[%s204 + $0xa8] sm:$0xff] %v247
                %v249 = vld [vmem:[%s203 + $0x130] sm:$0xff]
                %250 = vst [vmem:[%s204 + $0xb0] sm:$0xff] %v249
                %v251 = vld [vmem:[%s203 + $0x138] sm:$0xff]
                %252 = vst [vmem:[%s204 + $0xb8] sm:$0xff] %v251
                %v253 = vld [vmem:[%s203 + $0x180] sm:$0xff]
                %254 = vst [vmem:[%s204 + $0xc0] sm:$0xff] %v253
                %v255 = vld [vmem:[%s203 + $0x188] sm:$0xff]
                %256 = vst [vmem:[%s204 + $0xc8] sm:$0xff] %v255
                %v257 = vld [vmem:[%s203 + $0x190] sm:$0xff]
                %258 = vst [vmem:[%s204 + $0xd0] sm:$0xff] %v257
                %v259 = vld [vmem:[%s203 + $0x198] sm:$0xff]
                %260 = vst [vmem:[%s204 + $0xd8] sm:$0xff] %v259
                %v261 = vld [vmem:[%s203 + $0x1a0] sm:$0xff]
                %262 = vst [vmem:[%s204 + $0xe0] sm:$0xff] %v261
                %v263 = vld [vmem:[%s203 + $0x1a8] sm:$0xff]
                %264 = vst [vmem:[%s204 + $0xe8] sm:$0xff] %v263
                %v265 = vld [vmem:[%s203 + $0x1b0] sm:$0xff]
                %266 = vst [vmem:[%s204 + $0xf0] sm:$0xff] %v265
                %v267 = vld [vmem:[%s203 + $0x1b8] sm:$0xff]
                %268 = vst [vmem:[%s204 + $0xf8] sm:$0xff] %v267
              $region49: #{_lambda_.1} parent=43 // loop_footer
                %s202 = sadd.s32 1, %s198
              $region50: #{_lambda_.1} parent=43 // loop_footer_branch
                %197 = sbr.rel target = $region46
              $region51: #{_lambda_.1} parent=43 // loop_exit
                _
            $region44: #{_lambda_.1} parent=35 // pred_fallthru
              _
          $region36: #{_lambda_.1} parent=31 // pred_fallthru
            _
          %345 = vnop
        $region32: #{_lambda_.1} parent=27 // pred_fallthru
          _
        // Predicated region
        $region67: #{_lambda_.1} parent=27 // pred_check
          %p346 = pneg %p57
        $region68: #{_lambda_.1} parent=27 // pred_check_branch
          %348 = sbr.rel (%p346) target = $region70
        $region69: #{_lambda_.1} parent=27 // pred_region
          %s349 = sand.u32 %s47, 1
          %s350 = sand.u32 %s47, 1
          %s351 = smul.addr %s350, 256
          %s352 = scalar_lea.vmem [#allocation3], %s351
          %s353 = smul.u32 8, %s11
          %s354 = smul.addr %s353, 8
          %s355 = scalar_lea.vmem %s1, %s354
          // Predicated region
          $region71: #{_lambda_.1} parent=69 // pred_check
            _
          $region72: #{_lambda_.1} parent=69 // pred_check_branch
            %357 = sbr.rel (0) target = $region74
          $region73: #{_lambda_.1} parent=69 // pred_region
            // Predicated region
            $region75: #{_lambda_.1} parent=73 // pred_check
              _
            $region76: #{_lambda_.1} parent=73 // pred_check_branch
              %359 = sbr.rel (0) target = $region78
            $region77: #{_lambda_.1} parent=73 // pred_region
              // Predicated region
              $region90: #{_lambda_.1} parent=77 // pred_check
                _
              $region91: #{_lambda_.1} parent=77 // pred_check_branch
                %436 = sbr.rel (0) target = $region93
              $region92: #{_lambda_.1} parent=77 // pred_region
                loop: start=0, step=1, limit=1
                $region94: #{_lambda_.1} parent=92 // loop_pre_header
                  _
                $region95: #{_lambda_.1} parent=92 // loop_header
                  %s438 = sphi 0, %s442
                  %p439 = scmp.ge.s32.totalorder %s438, 1
                  %s443 = sphi %s355, %s355
                  %s444 = sphi %s352, %s352
                $region96: #{_lambda_.1} parent=92 // loop_header_branch
                  %441 = sbr.rel (%p439) target = $region100
                $region97: #{_lambda_.1} parent=92 // loop_body
                  %v445 = vld [vmem:[%s443] sm:$0xff]
                  %446 = vst [vmem:[%s444] sm:$0xff] %v445
                  %v447 = vld [vmem:[%s443 + $0x8] sm:$0xff]
                  %448 = vst [vmem:[%s444 + $0x8] sm:$0xff] %v447
                  %v449 = vld [vmem:[%s443 + $0x10] sm:$0xff]
                  %450 = vst [vmem:[%s444 + $0x10] sm:$0xff] %v449
                  %v451 = vld [vmem:[%s443 + $0x18] sm:$0xff]
                  %452 = vst [vmem:[%s444 + $0x18] sm:$0xff] %v451
                  %v453 = vld [vmem:[%s443 + $0x20] sm:$0xff]
                  %454 = vst [vmem:[%s444 + $0x20] sm:$0xff] %v453
                  %v455 = vld [vmem:[%s443 + $0x28] sm:$0xff]
                  %456 = vst [vmem:[%s444 + $0x28] sm:$0xff] %v455
                  %v457 = vld [vmem:[%s443 + $0x30] sm:$0xff]
                  %458 = vst [vmem:[%s444 + $0x30] sm:$0xff] %v457
                  %v459 = vld [vmem:[%s443 + $0x38] sm:$0xff]
                  %460 = vst [vmem:[%s444 + $0x38] sm:$0xff] %v459
                  %v461 = vld [vmem:[%s443 + $0x80] sm:$0xff]
                  %462 = vst [vmem:[%s444 + $0x40] sm:$0xff] %v461
                  %v463 = vld [vmem:[%s443 + $0x88] sm:$0xff]
                  %464 = vst [vmem:[%s444 + $0x48] sm:$0xff] %v463
                  %v465 = vld [vmem:[%s443 + $0x90] sm:$0xff]
                  %466 = vst [vmem:[%s444 + $0x50] sm:$0xff] %v465
                  %v467 = vld [vmem:[%s443 + $0x98] sm:$0xff]
                  %468 = vst [vmem:[%s444 + $0x58] sm:$0xff] %v467
                  %v469 = vld [vmem:[%s443 + $0xa0] sm:$0xff]
                  %470 = vst [vmem:[%s444 + $0x60] sm:$0xff] %v469
                  %v471 = vld [vmem:[%s443 + $0xa8] sm:$0xff]
                  %472 = vst [vmem:[%s444 + $0x68] sm:$0xff] %v471
                  %v473 = vld [vmem:[%s443 + $0xb0] sm:$0xff]
                  %474 = vst [vmem:[%s444 + $0x70] sm:$0xff] %v473
                  %v475 = vld [vmem:[%s443 + $0xb8] sm:$0xff]
                  %476 = vst [vmem:[%s444 + $0x78] sm:$0xff] %v475
                  %v477 = vld [vmem:[%s443 + $0x100] sm:$0xff]
                  %478 = vst [vmem:[%s444 + $0x80] sm:$0xff] %v477
                  %v479 = vld [vmem:[%s443 + $0x108] sm:$0xff]
                  %480 = vst [vmem:[%s444 + $0x88] sm:$0xff] %v479
                  %v481 = vld [vmem:[%s443 + $0x110] sm:$0xff]
                  %482 = vst [vmem:[%s444 + $0x90] sm:$0xff] %v481
                  %v483 = vld [vmem:[%s443 + $0x118] sm:$0xff]
                  %484 = vst [vmem:[%s444 + $0x98] sm:$0xff] %v483
                  %v485 = vld [vmem:[%s443 + $0x120] sm:$0xff]
                  %486 = vst [vmem:[%s444 + $0xa0] sm:$0xff] %v485
                  %v487 = vld [vmem:[%s443 + $0x128] sm:$0xff]
                  %488 = vst [vmem:[%s444 + $0xa8] sm:$0xff] %v487
                  %v489 = vld [vmem:[%s443 + $0x130] sm:$0xff]
                  %490 = vst [vmem:[%s444 + $0xb0] sm:$0xff] %v489
                  %v491 = vld [vmem:[%s443 + $0x138] sm:$0xff]
                  %492 = vst [vmem:[%s444 + $0xb8] sm:$0xff] %v491
                  %v493 = vld [vmem:[%s443 + $0x180] sm:$0xff]
                  %494 = vst [vmem:[%s444 + $0xc0] sm:$0xff] %v493
                  %v495 = vld [vmem:[%s443 + $0x188] sm:$0xff]
                  %496 = vst [vmem:[%s444 + $0xc8] sm:$0xff] %v495
                  %v497 = vld [vmem:[%s443 + $0x190] sm:$0xff]
                  %498 = vst [vmem:[%s444 + $0xd0] sm:$0xff] %v497
                  %v499 = vld [vmem:[%s443 + $0x198] sm:$0xff]
                  %500 = vst [vmem:[%s444 + $0xd8] sm:$0xff] %v499
                  %v501 = vld [vmem:[%s443 + $0x1a0] sm:$0xff]
                  %502 = vst [vmem:[%s444 + $0xe0] sm:$0xff] %v501
                  %v503 = vld [vmem:[%s443 + $0x1a8] sm:$0xff]
                  %504 = vst [vmem:[%s444 + $0xe8] sm:$0xff] %v503
                  %v505 = vld [vmem:[%s443 + $0x1b0] sm:$0xff]
                  %506 = vst [vmem:[%s444 + $0xf0] sm:$0xff] %v505
                  %v507 = vld [vmem:[%s443 + $0x1b8] sm:$0xff]
                  %508 = vst [vmem:[%s444 + $0xf8] sm:$0xff] %v507
                $region98: #{_lambda_.1} parent=92 // loop_footer
                  %s442 = sadd.s32 1, %s438
                $region99: #{_lambda_.1} parent=92 // loop_footer_branch
                  %437 = sbr.rel target = $region95
                $region100: #{_lambda_.1} parent=92 // loop_exit
                  _
              $region93: #{_lambda_.1} parent=77 // pred_fallthru
                _
              // Predicated region
              $region101: #{_lambda_.1} parent=77 // pred_check
                _
              $region102: #{_lambda_.1} parent=77 // pred_check_branch
                %510 = sbr.rel target = $region104
              $region103: #{_lambda_.1} parent=77 // pred_region
                _
              $region104: #{_lambda_.1} parent=77 // pred_fallthru
                _
            $region78: #{_lambda_.1} parent=73 // pred_fallthru
              _
            // Predicated region
            $region79: #{_lambda_.1} parent=73 // pred_check
              _
            $region80: #{_lambda_.1} parent=73 // pred_check_branch
              %361 = sbr.rel target = $region82
            $region81: #{_lambda_.1} parent=73 // pred_region
              loop: start=0, step=1, limit=1
              $region83: #{_lambda_.1} parent=81 // loop_pre_header
                _
              $region84: #{_lambda_.1} parent=81 // loop_header
                %s364 = sphi 0, %s368
                %p365 = scmp.ge.s32.totalorder %s364, 1
                %s369 = sphi %s355, %s355
                %s370 = sphi %s352, %s352
              $region85: #{_lambda_.1} parent=81 // loop_header_branch
                %367 = sbr.rel (%p365) target = $region89
              $region86: #{_lambda_.1} parent=81 // loop_body
                %v371 = vld [vmem:[%s369] sm:$0xff]
                %372 = vst [vmem:[%s370] sm:$0xff] %v371
                %v373 = vld [vmem:[%s369 + $0x8] sm:$0xff]
                %374 = vst [vmem:[%s370 + $0x8] sm:$0xff] %v373
                %v375 = vld [vmem:[%s369 + $0x10] sm:$0xff]
                %376 = vst [vmem:[%s370 + $0x10] sm:$0xff] %v375
                %v377 = vld [vmem:[%s369 + $0x18] sm:$0xff]
                %378 = vst [vmem:[%s370 + $0x18] sm:$0xff] %v377
                %v379 = vld [vmem:[%s369 + $0x20] sm:$0xff]
                %380 = vst [vmem:[%s370 + $0x20] sm:$0xff] %v379
                %v381 = vld [vmem:[%s369 + $0x28] sm:$0xff]
                %382 = vst [vmem:[%s370 + $0x28] sm:$0xff] %v381
                %v383 = vld [vmem:[%s369 + $0x30] sm:$0xff]
                %384 = vst [vmem:[%s370 + $0x30] sm:$0xff] %v383
                %v385 = vld [vmem:[%s369 + $0x38] sm:$0xff]
                %386 = vst [vmem:[%s370 + $0x38] sm:$0xff] %v385
                %v387 = vld [vmem:[%s369 + $0x80] sm:$0xff]
                %388 = vst [vmem:[%s370 + $0x40] sm:$0xff] %v387
                %v389 = vld [vmem:[%s369 + $0x88] sm:$0xff]
                %390 = vst [vmem:[%s370 + $0x48] sm:$0xff] %v389
                %v391 = vld [vmem:[%s369 + $0x90] sm:$0xff]
                %392 = vst [vmem:[%s370 + $0x50] sm:$0xff] %v391
                %v393 = vld [vmem:[%s369 + $0x98] sm:$0xff]
                %394 = vst [vmem:[%s370 + $0x58] sm:$0xff] %v393
                %v395 = vld [vmem:[%s369 + $0xa0] sm:$0xff]
                %396 = vst [vmem:[%s370 + $0x60] sm:$0xff] %v395
                %v397 = vld [vmem:[%s369 + $0xa8] sm:$0xff]
                %398 = vst [vmem:[%s370 + $0x68] sm:$0xff] %v397
                %v399 = vld [vmem:[%s369 + $0xb0] sm:$0xff]
                %400 = vst [vmem:[%s370 + $0x70] sm:$0xff] %v399
                %v401 = vld [vmem:[%s369 + $0xb8] sm:$0xff]
                %402 = vst [vmem:[%s370 + $0x78] sm:$0xff] %v401
                %v403 = vld [vmem:[%s369 + $0x100] sm:$0xff]
                %404 = vst [vmem:[%s370 + $0x80] sm:$0xff] %v403
                %v405 = vld [vmem:[%s369 + $0x108] sm:$0xff]
                %406 = vst [vmem:[%s370 + $0x88] sm:$0xff] %v405
                %v407 = vld [vmem:[%s369 + $0x110] sm:$0xff]
                %408 = vst [vmem:[%s370 + $0x90] sm:$0xff] %v407
                %v409 = vld [vmem:[%s369 + $0x118] sm:$0xff]
                %410 = vst [vmem:[%s370 + $0x98] sm:$0xff] %v409
                %v411 = vld [vmem:[%s369 + $0x120] sm:$0xff]
                %412 = vst [vmem:[%s370 + $0xa0] sm:$0xff] %v411
                %v413 = vld [vmem:[%s369 + $0x128] sm:$0xff]
                %414 = vst [vmem:[%s370 + $0xa8] sm:$0xff] %v413
                %v415 = vld [vmem:[%s369 + $0x130] sm:$0xff]
                %416 = vst [vmem:[%s370 + $0xb0] sm:$0xff] %v415
                %v417 = vld [vmem:[%s369 + $0x138] sm:$0xff]
                %418 = vst [vmem:[%s370 + $0xb8] sm:$0xff] %v417
                %v419 = vld [vmem:[%s369 + $0x180] sm:$0xff]
                %420 = vst [vmem:[%s370 + $0xc0] sm:$0xff] %v419
                %v421 = vld [vmem:[%s369 + $0x188] sm:$0xff]
                %422 = vst [vmem:[%s370 + $0xc8] sm:$0xff] %v421
                %v423 = vld [vmem:[%s369 + $0x190] sm:$0xff]
                %424 = vst [vmem:[%s370 + $0xd0] sm:$0xff] %v423
                %v425 = vld [vmem:[%s369 + $0x198] sm:$0xff]
                %426 = vst [vmem:[%s370 + $0xd8] sm:$0xff] %v425
                %v427 = vld [vmem:[%s369 + $0x1a0] sm:$0xff]
                %428 = vst [vmem:[%s370 + $0xe0] sm:$0xff] %v427
                %v429 = vld [vmem:[%s369 + $0x1a8] sm:$0xff]
                %430 = vst [vmem:[%s370 + $0xe8] sm:$0xff] %v429
                %v431 = vld [vmem:[%s369 + $0x1b0] sm:$0xff]
                %432 = vst [vmem:[%s370 + $0xf0] sm:$0xff] %v431
                %v433 = vld [vmem:[%s369 + $0x1b8] sm:$0xff]
                %434 = vst [vmem:[%s370 + $0xf8] sm:$0xff] %v433
              $region87: #{_lambda_.1} parent=81 // loop_footer
                %s368 = sadd.s32 1, %s364
              $region88: #{_lambda_.1} parent=81 // loop_footer_branch
                %363 = sbr.rel target = $region84
              $region89: #{_lambda_.1} parent=81 // loop_exit
                _
            $region82: #{_lambda_.1} parent=73 // pred_fallthru
              _
          $region74: #{_lambda_.1} parent=69 // pred_fallthru
            _
          %511 = vnop
        $region70: #{_lambda_.1} parent=27 // pred_fallthru
          _
      $region28: #{_lambda_.1} parent=5 // pred_fallthru
        _
      %p512 = scmp.le.s32.totalorder 1, %s11
      %p513 = scmp.lt.s32.totalorder %s11, 3
      %p514 = pnand %p512, %p513
      %p515 = pneg %p514
      // Predicated region
      $region105: #{_lambda_.1} parent=5 // pred_check
        _
      $region106: #{_lambda_.1} parent=5 // pred_check_branch
        %517 = sbr.rel (%p514) target = $region108
      $region107: #{_lambda_.1} parent=5 // pred_region
        %s518 = ssub.s32 %s11, 1
        %s519 = sand.u32 %s24, 1
        %s520 = sand.u32 %s24, 1
        %s521 = smul.addr %s520, 256
        %s522 = scalar_lea.vmem [#allocation2], %s521
        // Predicated region
        $region109: #{_lambda_.1} parent=107 // pred_check
          %p523 = pneg %p37
        $region110: #{_lambda_.1} parent=107 // pred_check_branch
          %525 = sbr.rel (%p523) target = $region112
        $region111: #{_lambda_.1} parent=107 // pred_region
          _
        $region112: #{_lambda_.1} parent=107 // pred_fallthru
          _
        %s526 = sand.u32 %s50, 1
        %s527 = sand.u32 %s50, 1
        %s528 = smul.addr %s527, 256
        %s529 = scalar_lea.vmem [#allocation3], %s528
        // Predicated region
        $region113: #{_lambda_.1} parent=107 // pred_check
          %p530 = pneg %p63
        $region114: #{_lambda_.1} parent=107 // pred_check_branch
          %532 = sbr.rel (%p530) target = $region116
        $region115: #{_lambda_.1} parent=107 // pred_region
          _
        $region116: #{_lambda_.1} parent=107 // pred_fallthru
          _
        %s533 = sand.u32 %s24, 1
        %s534 = sand.u32 %s24, 1
        %s535 = smul.addr %s534, 256
        %s536 = scalar_lea.vmem [#allocation2], %s535
        %p537 = pneg %p37
        %p538 = pneg %p34
        %s539 = sand.u32 %s50, 1
        %s540 = sand.u32 %s50, 1
        %s541 = smul.addr %s540, 256
        %s542 = scalar_lea.vmem [#allocation3], %s541
        %p543 = pneg %p63
        %p544 = pneg %p60
        %p545 = pneg %p84
        %p546 = pneg %p81
        %p547 = pneg %p105
        %p548 = pneg %p102
        %p549 = pneg %p126
        %p550 = pneg %p123
        %p551 = pneg %p152
        %p552 = pneg %p149
        %s553 = sand.u32 %s139, 1
        %s554 = sand.u32 %s139, 1
        %s555 = smul.addr %s554, 256
        %s556 = scalar_lea.vmem [#allocation4], %s555
        %s557 = smul.u32 8, %s16
        %s558 = smul.u32 8, %s16
        %s559 = smul.u32 8, %s16
        %v560 = vld [vmem:[%s522] sm:$0xff]
        %v561 = vld [vmem:[%s522 + $0x8] sm:$0xff]
        %v562 = vld [vmem:[%s522 + $0x10] sm:$0xff]
        %v563 = vld [vmem:[%s522 + $0x18] sm:$0xff]
        %v564 = vld [vmem:[%s522 + $0x20] sm:$0xff]
        %v565 = vld [vmem:[%s522 + $0x28] sm:$0xff]
        %v566 = vld [vmem:[%s522 + $0x30] sm:$0xff]
        %v567 = vld [vmem:[%s522 + $0x38] sm:$0xff]
        %v568 = vld [vmem:[%s522 + $0x40] sm:$0xff]
        %v569 = vld [vmem:[%s522 + $0x48] sm:$0xff]
        %v570 = vld [vmem:[%s522 + $0x50] sm:$0xff]
        %v571 = vld [vmem:[%s522 + $0x58] sm:$0xff]
        %v572 = vld [vmem:[%s522 + $0x60] sm:$0xff]
        %v573 = vld [vmem:[%s522 + $0x68] sm:$0xff]
        %v574 = vld [vmem:[%s522 + $0x70] sm:$0xff]
        %v575 = vld [vmem:[%s522 + $0x78] sm:$0xff]
        %v576 = vld [vmem:[%s522 + $0x80] sm:$0xff]
        %v577 = vld [vmem:[%s522 + $0x88] sm:$0xff]
        %v578 = vld [vmem:[%s522 + $0x90] sm:$0xff]
        %v579 = vld [vmem:[%s522 + $0x98] sm:$0xff]
        %v580 = vld [vmem:[%s522 + $0xa0] sm:$0xff]
        %v581 = vld [vmem:[%s522 + $0xa8] sm:$0xff]
        %v582 = vld [vmem:[%s522 + $0xb0] sm:$0xff]
        %v583 = vld [vmem:[%s522 + $0xb8] sm:$0xff]
        %v584 = vld [vmem:[%s522 + $0xc0] sm:$0xff]
        %v585 = vld [vmem:[%s522 + $0xc8] sm:$0xff]
        %v586 = vld [vmem:[%s522 + $0xd0] sm:$0xff]
        %v587 = vld [vmem:[%s522 + $0xd8] sm:$0xff]
        %v588 = vld [vmem:[%s522 + $0xe0] sm:$0xff]
        %v589 = vld [vmem:[%s522 + $0xe8] sm:$0xff]
        %v590 = vld [vmem:[%s522 + $0xf0] sm:$0xff]
        %v591 = vld [vmem:[%s522 + $0xf8] sm:$0xff]
        %v592 = vld [vmem:[%s2] sm:$0xff]
        %v593 = vld [vmem:[%s2 + $0x8] sm:$0xff]
        %vm594 = vcmask 130048
        %v596 = vsel %vm594, %v560, 0
        %v599 = vsel %vm594, %v561, 0
        %v602 = vsel %vm594, %v562, 0
        %v605 = vsel %vm594, %v563, 0
        %v608 = vsel %vm594, %v564, 0
        %v611 = vsel %vm594, %v565, 0
        %v614 = vsel %vm594, %v566, 0
        %v617 = vsel %vm594, %v567, 0
        %v620 = vsel %vm594, %v568, 0
        %v623 = vsel %vm594, %v569, 0
        %v626 = vsel %vm594, %v570, 0
        %v629 = vsel %vm594, %v571, 0
        %v632 = vsel %vm594, %v572, 0
        %v635 = vsel %vm594, %v573, 0
        %v638 = vsel %vm594, %v574, 0
        %v641 = vsel %vm594, %v575, 0
        %v644 = vsel %vm594, %v576, 0
        %v647 = vsel %vm594, %v577, 0
        %v650 = vsel %vm594, %v578, 0
        %v653 = vsel %vm594, %v579, 0
        %v656 = vsel %vm594, %v580, 0
        %v659 = vsel %vm594, %v581, 0
        %v662 = vsel %vm594, %v582, 0
        %v665 = vsel %vm594, %v583, 0
        %v668 = vsel %vm594, %v584, 0
        %v671 = vsel %vm594, %v585, 0
        %v674 = vsel %vm594, %v586, 0
        %v677 = vsel %vm594, %v587, 0
        %v680 = vsel %vm594, %v588, 0
        %v683 = vsel %vm594, %v589, 0
        %v686 = vsel %vm594, %v590, 0
        %v689 = vsel %vm594, %v591, 0
        %691 = vmatprep.subr.mxu0 0.0
        %692 = vmatpush1.msra.mxu0 %v592
        %693 = vmatprep.subr.mxu0 0.0
        %694 = vmatpush1.msra.mxu0 %v593
        %695 = vmatprep.subr.mxu0 0.0
        %696 = vmatpush1.msra.mxu0 0.0
        %697 = vmatprep.subr.mxu0 0.0
        %698 = vmatpush1.msra.mxu0 0.0
        %699 = vmatprep.subr.mxu0 0.0
        %700 = vmatpush1.msra.mxu0 0.0
        %701 = vmatprep.subr.mxu0 0.0
        %702 = vmatpush1.msra.mxu0 0.0
        %703 = vmatprep.subr.mxu0 0.0
        %704 = vmatpush1.msra.mxu0 0.0
        %705 = vmatprep.subr.mxu0 0.0
        %706 = vmatpush1.msra.mxu0 0.0
        %707 = vmatprep.subr.mxu0 0.0
        %708 = vmatpush1.msra.mxu0 0.0
        %709 = vmatprep.subr.mxu0 0.0
        %710 = vmatpush1.msra.mxu0 0.0
        %711 = vmatprep.subr.mxu0 0.0
        %712 = vmatpush1.msra.mxu0 0.0
        %713 = vmatprep.subr.mxu0 0.0
        %714 = vmatpush1.msra.mxu0 0.0
        %715 = vmatprep.subr.mxu0 0.0
        %716 = vmatpush1.msra.mxu0 0.0
        %717 = vmatprep.subr.mxu0 0.0
        %718 = vmatpush1.msra.mxu0 0.0
        %719 = vmatprep.subr.mxu0 0.0
        %720 = vmatpush1.msra.mxu0 0.0
        %721 = vmatprep.subr.mxu0 0.0
        %722 = vmatpush1.msra.mxu0 0.0
        %723 = vmatprep.subr.mxu0 0.0
        %724 = vmatpush1.msra.mxu0 0.0
        %725 = vmatprep.subr.mxu0 0.0
        %726 = vmatpush1.msra.mxu0 0.0
        %727 = vmatprep.subr.mxu0 0.0
        %728 = vmatpush1.msra.mxu0 0.0
        %729 = vmatprep.subr.mxu0 0.0
        %730 = vmatpush1.msra.mxu0 0.0
        %731 = vmatprep.subr.mxu0 0.0
        %732 = vmatpush1.msra.mxu0 0.0
        %733 = vmatprep.subr.mxu0 0.0
        %734 = vmatpush1.msra.mxu0 0.0
        %735 = vmatprep.subr.mxu0 0.0
        %736 = vmatpush1.msra.mxu0 0.0
        %737 = vmatprep.subr.mxu0 0.0
        %738 = vmatpush1.msra.mxu0 0.0
        %739 = vmatprep.subr.mxu0 0.0
        %740 = vmatpush1.msra.mxu0 0.0
        %741 = vmatprep.subr.mxu0 0.0
        %742 = vmatpush1.msra.mxu0 0.0
        %743 = vmatprep.subr.mxu0 0.0
        %744 = vmatpush1.msra.mxu0 0.0
        %745 = vmatprep.subr.mxu0 0.0
        %746 = vmatpush1.msra.mxu0 0.0
        %747 = vmatprep.subr.mxu0 0.0
        %748 = vmatpush1.msra.mxu0 0.0
        %749 = vmatprep.subr.mxu0 0.0
        %750 = vmatpush1.msra.mxu0 0.0
        %751 = vmatprep.subr.mxu0 0.0
        %752 = vmatpush1.msra.mxu0 0.0
        %753 = vmatprep.subr.mxu0 0.0
        %754 = vmatpush1.msra.mxu0 0.0
        %755 = vmatprep.mubr.f32.mxu0 0.0
        %756 = vmatmul.mubr.f32.gmra.mrb[0].mxu0 %v596
        %v757 = vpop.f32.mrb[0].mxu0
        %v758 = vadd.f32 0.0, %v757
        %v759 = vpop.f32.mrb[0].mxu0
        %760 = vmatprep.mubr.f32.mxu0 0.0
        %761 = vmatmul.mubr.f32.gmra.mrb[0].mxu0 %v599
        %v762 = vpop.f32.mrb[0].mxu0
        %v763 = vadd.f32 0.0, %v762
        %v764 = vpop.f32.mrb[0].mxu0
        %765 = vmatprep.mubr.f32.mxu0 0.0
        %766 = vmatmul.mubr.f32.gmra.mrb[0].mxu0 %v602
        %v767 = vpop.f32.mrb[0].mxu0
        %v768 = vadd.f32 0.0, %v767
        %v769 = vpop.f32.mrb[0].mxu0
        %770 = vmatprep.mubr.f32.mxu0 0.0
        %771 = vmatmul.mubr.f32.gmra.mrb[0].mxu0 %v605
        %v772 = vpop.f32.mrb[0].mxu0
        %v773 = vadd.f32 0.0, %v772
        %v774 = vpop.f32.mrb[0].mxu0
        %775 = vmatprep.mubr.f32.mxu0 0.0
        %776 = vmatmul.mubr.f32.gmra.mrb[0].mxu0 %v608
        %v777 = vpop.f32.mrb[0].mxu0
        %v778 = vadd.f32 0.0, %v777
        %v779 = vpop.f32.mrb[0].mxu0
        %780 = vmatprep.mubr.f32.mxu0 0.0
        %781 = vmatmul.mubr.f32.gmra.mrb[0].mxu0 %v611
        %v782 = vpop.f32.mrb[0].mxu0
        %v783 = vadd.f32 0.0, %v782
        %v784 = vpop.f32.mrb[0].mxu0
        %785 = vmatprep.mubr.f32.mxu0 0.0
        %786 = vmatmul.mubr.f32.gmra.mrb[0].mxu0 %v614
        %v787 = vpop.f32.mrb[0].mxu0
        %v788 = vadd.f32 0.0, %v787
        %v789 = vpop.f32.mrb[0].mxu0
        %790 = vmatprep.mubr.f32.mxu0 0.0
        %791 = vmatmul.mubr.f32.gmra.mrb[0].mxu0 %v617
        %v792 = vpop.f32.mrb[0].mxu0
        %v793 = vadd.f32 0.0, %v792
        %v794 = vpop.f32.mrb[0].mxu0
        %795 = vmatprep.mubr.f32.mxu0 0.0
        %796 = vmatmul.mubr.f32.gmra.mrb[0].mxu0 %v620
        %v797 = vpop.f32.mrb[0].mxu0
        %v798 = vadd.f32 0.0, %v797
        %v799 = vpop.f32.mrb[0].mxu0
        %800 = vmatprep.mubr.f32.mxu0 0.0
        %801 = vmatmul.mubr.f32.gmra.mrb[0].mxu0 %v623
        %v802 = vpop.f32.mrb[0].mxu0
        %v803 = vadd.f32 0.0, %v802
        %v804 = vpop.f32.mrb[0].mxu0
        %805 = vmatprep.mubr.f32.mxu0 0.0
        %806 = vmatmul.mubr.f32.gmra.mrb[0].mxu0 %v626
        %v807 = vpop.f32.mrb[0].mxu0
        %v808 = vadd.f32 0.0, %v807
        %v809 = vpop.f32.mrb[0].mxu0
        %810 = vmatprep.mubr.f32.mxu0 0.0
        %811 = vmatmul.mubr.f32.gmra.mrb[0].mxu0 %v629
        %v812 = vpop.f32.mrb[0].mxu0
        %v813 = vadd.f32 0.0, %v812
        %v814 = vpop.f32.mrb[0].mxu0
        %815 = vmatprep.mubr.f32.mxu0 0.0
        %816 = vmatmul.mubr.f32.gmra.mrb[0].mxu0 %v632
        %v817 = vpop.f32.mrb[0].mxu0
        %v818 = vadd.f32 0.0, %v817
        %v819 = vpop.f32.mrb[0].mxu0
        %820 = vmatprep.mubr.f32.mxu0 0.0
        %821 = vmatmul.mubr.f32.gmra.mrb[0].mxu0 %v635
        %v822 = vpop.f32.mrb[0].mxu0
        %v823 = vadd.f32 0.0, %v822
        %v824 = vpop.f32.mrb[0].mxu0
        %825 = vmatprep.mubr.f32.mxu0 0.0
        %826 = vmatmul.mubr.f32.gmra.mrb[0].mxu0 %v638
        %v827 = vpop.f32.mrb[0].mxu0
        %v828 = vadd.f32 0.0, %v827
        %v829 = vpop.f32.mrb[0].mxu0
        %830 = vmatprep.mubr.f32.mxu0 0.0
        %831 = vmatmul.mubr.f32.gmra.mrb[0].mxu0 %v641
        %v832 = vpop.f32.mrb[0].mxu0
        %v833 = vadd.f32 0.0, %v832
        %v834 = vpop.f32.mrb[0].mxu0
        %835 = vmatprep.mubr.f32.mxu0 0.0
        %836 = vmatmul.mubr.f32.gmra.mrb[0].mxu0 %v644
        %v837 = vpop.f32.mrb[0].mxu0
        %v838 = vadd.f32 0.0, %v837
        %v839 = vpop.f32.mrb[0].mxu0
        %840 = vmatprep.mubr.f32.mxu0 0.0
        %841 = vmatmul.mubr.f32.gmra.mrb[0].mxu0 %v647
        %v842 = vpop.f32.mrb[0].mxu0
        %v843 = vadd.f32 0.0, %v842
        %v844 = vpop.f32.mrb[0].mxu0
        %845 = vmatprep.mubr.f32.mxu0 0.0
        %846 = vmatmul.mubr.f32.gmra.mrb[0].mxu0 %v650
        %v847 = vpop.f32.mrb[0].mxu0
        %v848 = vadd.f32 0.0, %v847
        %v849 = vpop.f32.mrb[0].mxu0
        %850 = vmatprep.mubr.f32.mxu0 0.0
        %851 = vmatmul.mubr.f32.gmra.mrb[0].mxu0 %v653
        %v852 = vpop.f32.mrb[0].mxu0
        %v853 = vadd.f32 0.0, %v852
        %v854 = vpop.f32.mrb[0].mxu0
        %855 = vmatprep.mubr.f32.mxu0 0.0
        %856 = vmatmul.mubr.f32.gmra.mrb[0].mxu0 %v656
        %v857 = vpop.f32.mrb[0].mxu0
        %v858 = vadd.f32 0.0, %v857
        %v859 = vpop.f32.mrb[0].mxu0
        %860 = vmatprep.mubr.f32.mxu0 0.0
        %861 = vmatmul.mubr.f32.gmra.mrb[0].mxu0 %v659
        %v862 = vpop.f32.mrb[0].mxu0
        %v863 = vadd.f32 0.0, %v862
        %v864 = vpop.f32.mrb[0].mxu0
        %865 = vmatprep.mubr.f32.mxu0 0.0
        %866 = vmatmul.mubr.f32.gmra.mrb[0].mxu0 %v662
        %v867 = vpop.f32.mrb[0].mxu0
        %v868 = vadd.f32 0.0, %v867
        %v869 = vpop.f32.mrb[0].mxu0
        %870 = vmatprep.mubr.f32.mxu0 0.0
        %871 = vmatmul.mubr.f32.gmra.mrb[0].mxu0 %v665
        %v872 = vpop.f32.mrb[0].mxu0
        %v873 = vadd.f32 0.0, %v872
        %v874 = vpop.f32.mrb[0].mxu0
        %875 = vmatprep.mubr.f32.mxu0 0.0
        %876 = vmatmul.mubr.f32.gmra.mrb[0].mxu0 %v668
        %v877 = vpop.f32.mrb[0].mxu0
        %v878 = vadd.f32 0.0, %v877
        %v879 = vpop.f32.mrb[0].mxu0
        %880 = vmatprep.mubr.f32.mxu0 0.0
        %881 = vmatmul.mubr.f32.gmra.mrb[0].mxu0 %v671
        %v882 = vpop.f32.mrb[0].mxu0
        %v883 = vadd.f32 0.0, %v882
        %v884 = vpop.f32.mrb[0].mxu0
        %885 = vmatprep.mubr.f32.mxu0 0.0
        %886 = vmatmul.mubr.f32.gmra.mrb[0].mxu0 %v674
        %v887 = vpop.f32.mrb[0].mxu0
        %v888 = vadd.f32 0.0, %v887
        %v889 = vpop.f32.mrb[0].mxu0
        %890 = vmatprep.mubr.f32.mxu0 0.0
        %891 = vmatmul.mubr.f32.gmra.mrb[0].mxu0 %v677
        %v892 = vpop.f32.mrb[0].mxu0
        %v893 = vadd.f32 0.0, %v892
        %v894 = vpop.f32.mrb[0].mxu0
        %895 = vmatprep.mubr.f32.mxu0 0.0
        %896 = vmatmul.mubr.f32.gmra.mrb[0].mxu0 %v680
        %v897 = vpop.f32.mrb[0].mxu0
        %v898 = vadd.f32 0.0, %v897
        %v899 = vpop.f32.mrb[0].mxu0
        %900 = vmatprep.mubr.f32.mxu0 0.0
        %901 = vmatmul.mubr.f32.gmra.mrb[0].mxu0 %v683
        %v902 = vpop.f32.mrb[0].mxu0
        %v903 = vadd.f32 0.0, %v902
        %v904 = vpop.f32.mrb[0].mxu0
        %905 = vmatprep.mubr.f32.mxu0 0.0
        %906 = vmatmul.mubr.f32.gmra.mrb[0].mxu0 %v686
        %v907 = vpop.f32.mrb[0].mxu0
        %v908 = vadd.f32 0.0, %v907
        %v909 = vpop.f32.mrb[0].mxu0
        %910 = vmatprep.mubr.f32.mxu0 0.0
        %911 = vmatmul.mubr.f32.gmra.mrb[0].mxu0 %v689
        %v912 = vpop.f32.mrb[0].mxu0
        %v913 = vadd.f32 0.0, %v912
        %v914 = vpop.f32.mrb[0].mxu0
        %915 = vdwg.mxu0
        %v916 = vadd.f32 %v758, %v798
        %v917 = vadd.f32 %v763, %v803
        %v918 = vadd.f32 %v768, %v808
        %v919 = vadd.f32 %v773, %v813
        %v920 = vadd.f32 %v778, %v818
        %v921 = vadd.f32 %v783, %v823
        %v922 = vadd.f32 %v788, %v828
        %v923 = vadd.f32 %v793, %v833
        %v924 = vsub.f32 %v758, %v798
        %v925 = vsub.f32 %v763, %v803
        %v926 = vsub.f32 %v768, %v808
        %v927 = vsub.f32 %v773, %v813
        %v928 = vsub.f32 %v778, %v818
        %v929 = vsub.f32 %v783, %v823
        %v930 = vsub.f32 %v788, %v828
        %v931 = vsub.f32 %v793, %v833
        %v932 = vadd.f32 %v838, %v878
        %v933 = vadd.f32 %v843, %v883
        %v934 = vadd.f32 %v848, %v888
        %v935 = vadd.f32 %v853, %v893
        %v936 = vadd.f32 %v858, %v898
        %v937 = vadd.f32 %v863, %v903
        %v938 = vadd.f32 %v868, %v908
        %v939 = vadd.f32 %v873, %v913
        %v940 = vsub.f32 %v838, %v878
        %v941 = vsub.f32 %v843, %v883
        %v942 = vsub.f32 %v848, %v888
        %v943 = vsub.f32 %v853, %v893
        %v944 = vsub.f32 %v858, %v898
        %v945 = vsub.f32 %v863, %v903
        %v946 = vsub.f32 %v868, %v908
        %v947 = vsub.f32 %v873, %v913
        %v948 = vadd.f32 %v916, %v932
        %v949 = vadd.f32 %v917, %v933
        %v950 = vadd.f32 %v918, %v934
        %v951 = vadd.f32 %v919, %v935
        %v952 = vadd.f32 %v920, %v936
        %v953 = vadd.f32 %v921, %v937
        %v954 = vadd.f32 %v922, %v938
        %v955 = vadd.f32 %v923, %v939
        %v956 = vsub.f32 %v916, %v932
        %v957 = vsub.f32 %v917, %v933
        %v958 = vsub.f32 %v918, %v934
        %v959 = vsub.f32 %v919, %v935
        %v960 = vsub.f32 %v920, %v936
        %v961 = vsub.f32 %v921, %v937
        %v962 = vsub.f32 %v922, %v938
        %v963 = vsub.f32 %v923, %v939
        %v964 = vadd.f32 %v924, %v940
        %v965 = vadd.f32 %v925, %v941
        %v966 = vadd.f32 %v926, %v942
        %v967 = vadd.f32 %v927, %v943
        %v968 = vadd.f32 %v928, %v944
        %v969 = vadd.f32 %v929, %v945
        %v970 = vadd.f32 %v930, %v946
        %v971 = vadd.f32 %v931, %v947
        %v972 = vsub.f32 %v924, %v940
        %v973 = vsub.f32 %v925, %v941
        %v974 = vsub.f32 %v926, %v942
        %v975 = vsub.f32 %v927, %v943
        %v976 = vsub.f32 %v928, %v944
        %v977 = vsub.f32 %v929, %v945
        %v978 = vsub.f32 %v930, %v946
        %v979 = vsub.f32 %v931, %v947
        %v980 = vld [vmem:[%s529] sm:$0xff]
        %v981 = vld [vmem:[%s529 + $0x8] sm:$0xff]
        %v982 = vld [vmem:[%s529 + $0x10] sm:$0xff]
        %v983 = vld [vmem:[%s529 + $0x18] sm:$0xff]
        %v984 = vld [vmem:[%s529 + $0x20] sm:$0xff]
        %v985 = vld [vmem:[%s529 + $0x28] sm:$0xff]
        %v986 = vld [vmem:[%s529 + $0x30] sm:$0xff]
        %v987 = vld [vmem:[%s529 + $0x38] sm:$0xff]
        %v988 = vld [vmem:[%s529 + $0x40] sm:$0xff]
        %v989 = vld [vmem:[%s529 + $0x48] sm:$0xff]
        %v990 = vld [vmem:[%s529 + $0x50] sm:$0xff]
        %v991 = vld [vmem:[%s529 + $0x58] sm:$0xff]
        %v992 = vld [vmem:[%s529 + $0x60] sm:$0xff]
        %v993 = vld [vmem:[%s529 + $0x68] sm:$0xff]
        %v994 = vld [vmem:[%s529 + $0x70] sm:$0xff]
        %v995 = vld [vmem:[%s529 + $0x78] sm:$0xff]
        %v996 = vld [vmem:[%s529 + $0x80] sm:$0xff]
        %v997 = vld [vmem:[%s529 + $0x88] sm:$0xff]
        %v998 = vld [vmem:[%s529 + $0x90] sm:$0xff]
        %v999 = vld [vmem:[%s529 + $0x98] sm:$0xff]
        %v1000 = vld [vmem:[%s529 + $0xa0] sm:$0xff]
        %v1001 = vld [vmem:[%s529 + $0xa8] sm:$0xff]
        %v1002 = vld [vmem:[%s529 + $0xb0] sm:$0xff]
        %v1003 = vld [vmem:[%s529 + $0xb8] sm:$0xff]
        %v1004 = vld [vmem:[%s529 + $0xc0] sm:$0xff]
        %v1005 = vld [vmem:[%s529 + $0xc8] sm:$0xff]
        %v1006 = vld [vmem:[%s529 + $0xd0] sm:$0xff]
        %v1007 = vld [vmem:[%s529 + $0xd8] sm:$0xff]
        %v1008 = vld [vmem:[%s529 + $0xe0] sm:$0xff]
        %v1009 = vld [vmem:[%s529 + $0xe8] sm:$0xff]
        %v1010 = vld [vmem:[%s529 + $0xf0] sm:$0xff]
        %v1011 = vld [vmem:[%s529 + $0xf8] sm:$0xff]
        %v1012 = vld [vmem:[%s3] sm:$0xff]
        %v1013 = vld [vmem:[%s3 + $0x8] sm:$0xff]
        %v1015 = vsel %vm594, %v980, 0
        %v1018 = vsel %vm594, %v981, 0
        %v1021 = vsel %vm594, %v982, 0
        %v1024 = vsel %vm594, %v983, 0
        %v1027 = vsel %vm594, %v984, 0
        %v1030 = vsel %vm594, %v985, 0
        %v1033 = vsel %vm594, %v986, 0
        %v1036 = vsel %vm594, %v987, 0
        %v1039 = vsel %vm594, %v988, 0
        %v1042 = vsel %vm594, %v989, 0
        %v1045 = vsel %vm594, %v990, 0
        %v1048 = vsel %vm594, %v991, 0
        %v1051 = vsel %vm594, %v992, 0
        %v1054 = vsel %vm594, %v993, 0
        %v1057 = vsel %vm594, %v994, 0
        %v1060 = vsel %vm594, %v995, 0
        %v1063 = vsel %vm594, %v996, 0
        %v1066 = vsel %vm594, %v997, 0
        %v1069 = vsel %vm594, %v998, 0
        %v1072 = vsel %vm594, %v999, 0
        %v1075 = vsel %vm594, %v1000, 0
        %v1078 = vsel %vm594, %v1001, 0
        %v1081 = vsel %vm594, %v1002, 0
        %v1084 = vsel %vm594, %v1003, 0
        %v1087 = vsel %vm594, %v1004, 0
        %v1090 = vsel %vm594, %v1005, 0
        %v1093 = vsel %vm594, %v1006, 0
        %v1096 = vsel %vm594, %v1007, 0
        %v1099 = vsel %vm594, %v1008, 0
        %v1102 = vsel %vm594, %v1009, 0
        %v1105 = vsel %vm594, %v1010, 0
        %v1108 = vsel %vm594, %v1011, 0
        %1110 = vmatprep.subr.mxu0 0.0
        %1111 = vmatpush1.msra.mxu0 %v1012
        %1112 = vmatprep.subr.mxu0 0.0
        %1113 = vmatpush1.msra.mxu0 %v1013
        %1114 = vmatprep.subr.mxu0 0.0
        %1115 = vmatpush1.msra.mxu0 0.0
        %1116 = vmatprep.subr.mxu0 0.0
        %1117 = vmatpush1.msra.mxu0 0.0
        %1118 = vmatprep.subr.mxu0 0.0
        %1119 = vmatpush1.msra.mxu0 0.0
        %1120 = vmatprep.subr.mxu0 0.0
        %1121 = vmatpush1.msra.mxu0 0.0
        %1122 = vmatprep.subr.mxu0 0.0
        %1123 = vmatpush1.msra.mxu0 0.0
        %1124 = vmatprep.subr.mxu0 0.0
        %1125 = vmatpush1.msra.mxu0 0.0
        %1126 = vmatprep.subr.mxu0 0.0
        %1127 = vmatpush1.msra.mxu0 0.0
        %1128 = vmatprep.subr.mxu0 0.0
        %1129 = vmatpush1.msra.mxu0 0.0
        %1130 = vmatprep.subr.mxu0 0.0
        %1131 = vmatpush1.msra.mxu0 0.0
        %1132 = vmatprep.subr.mxu0 0.0
        %1133 = vmatpush1.msra.mxu0 0.0
        %1134 = vmatprep.subr.mxu0 0.0
        %1135 = vmatpush1.msra.mxu0 0.0
        %1136 = vmatprep.subr.mxu0 0.0
        %1137 = vmatpush1.msra.mxu0 0.0
        %1138 = vmatprep.subr.mxu0 0.0
        %1139 = vmatpush1.msra.mxu0 0.0
        %1140 = vmatprep.subr.mxu0 0.0
        %1141 = vmatpush1.msra.mxu0 0.0
        %1142 = vmatprep.subr.mxu0 0.0
        %1143 = vmatpush1.msra.mxu0 0.0
        %1144 = vmatprep.subr.mxu0 0.0
        %1145 = vmatpush1.msra.mxu0 0.0
        %1146 = vmatprep.subr.mxu0 0.0
        %1147 = vmatpush1.msra.mxu0 0.0
        %1148 = vmatprep.subr.mxu0 0.0
        %1149 = vmatpush1.msra.mxu0 0.0
        %1150 = vmatprep.subr.mxu0 0.0
        %1151 = vmatpush1.msra.mxu0 0.0
        %1152 = vmatprep.subr.mxu0 0.0
        %1153 = vmatpush1.msra.mxu0 0.0
        %1154 = vmatprep.subr.mxu0 0.0
        %1155 = vmatpush1.msra.mxu0 0.0
        %1156 = vmatprep.subr.mxu0 0.0
        %1157 = vmatpush1.msra.mxu0 0.0
        %1158 = vmatprep.subr.mxu0 0.0
        %1159 = vmatpush1.msra.mxu0 0.0
        %1160 = vmatprep.subr.mxu0 0.0
        %1161 = vmatpush1.msra.mxu0 0.0
        %1162 = vmatprep.subr.mxu0 0.0
        %1163 = vmatpush1.msra.mxu0 0.0
        %1164 = vmatprep.subr.mxu0 0.0
        %1165 = vmatpush1.msra.mxu0 0.0
        %1166 = vmatprep.subr.mxu0 0.0
        %1167 = vmatpush1.msra.mxu0 0.0
        %1168 = vmatprep.subr.mxu0 0.0
        %1169 = vmatpush1.msra.mxu0 0.0
        %1170 = vmatprep.subr.mxu0 0.0
        %1171 = vmatpush1.msra.mxu0 0.0
        %1172 = vmatprep.subr.mxu0 0.0
        %1173 = vmatpush1.msra.mxu0 0.0
        %1174 = vmatprep.mubr.f32.mxu0 0.0
        %1175 = vmatmul.mubr.f32.gmra.mrb[0].mxu0 %v1015
        %v1176 = vpop.f32.mrb[0].mxu0
        %v1177 = vadd.f32 0.0, %v1176
        %v1178 = vpop.f32.mrb[0].mxu0
        %1179 = vmatprep.mubr.f32.mxu0 0.0
        %1180 = vmatmul.mubr.f32.gmra.mrb[0].mxu0 %v1018
        %v1181 = vpop.f32.mrb[0].mxu0
        %v1182 = vadd.f32 0.0, %v1181
        %v1183 = vpop.f32.mrb[0].mxu0
        %1184 = vmatprep.mubr.f32.mxu0 0.0
        %1185 = vmatmul.mubr.f32.gmra.mrb[0].mxu0 %v1021
        %v1186 = vpop.f32.mrb[0].mxu0
        %v1187 = vadd.f32 0.0, %v1186
        %v1188 = vpop.f32.mrb[0].mxu0
        %1189 = vmatprep.mubr.f32.mxu0 0.0
        %1190 = vmatmul.mubr.f32.gmra.mrb[0].mxu0 %v1024
        %v1191 = vpop.f32.mrb[0].mxu0
        %v1192 = vadd.f32 0.0, %v1191
        %v1193 = vpop.f32.mrb[0].mxu0
        %1194 = vmatprep.mubr.f32.mxu0 0.0
        %1195 = vmatmul.mubr.f32.gmra.mrb[0].mxu0 %v1027
        %v1196 = vpop.f32.mrb[0].mxu0
        %v1197 = vadd.f32 0.0, %v1196
        %v1198 = vpop.f32.mrb[0].mxu0
        %1199 = vmatprep.mubr.f32.mxu0 0.0
        %1200 = vmatmul.mubr.f32.gmra.mrb[0].mxu0 %v1030
        %v1201 = vpop.f32.mrb[0].mxu0
        %v1202 = vadd.f32 0.0, %v1201
        %v1203 = vpop.f32.mrb[0].mxu0
        %1204 = vmatprep.mubr.f32.mxu0 0.0
        %1205 = vmatmul.mubr.f32.gmra.mrb[0].mxu0 %v1033
        %v1206 = vpop.f32.mrb[0].mxu0
        %v1207 = vadd.f32 0.0, %v1206
        %v1208 = vpop.f32.mrb[0].mxu0
        %1209 = vmatprep.mubr.f32.mxu0 0.0
        %1210 = vmatmul.mubr.f32.gmra.mrb[0].mxu0 %v1036
        %v1211 = vpop.f32.mrb[0].mxu0
        %v1212 = vadd.f32 0.0, %v1211
        %v1213 = vpop.f32.mrb[0].mxu0
        %1214 = vmatprep.mubr.f32.mxu0 0.0
        %1215 = vmatmul.mubr.f32.gmra.mrb[0].mxu0 %v1039
        %v1216 = vpop.f32.mrb[0].mxu0
        %v1217 = vadd.f32 0.0, %v1216
        %v1218 = vpop.f32.mrb[0].mxu0
        %1219 = vmatprep.mubr.f32.mxu0 0.0
        %1220 = vmatmul.mubr.f32.gmra.mrb[0].mxu0 %v1042
        %v1221 = vpop.f32.mrb[0].mxu0
        %v1222 = vadd.f32 0.0, %v1221
        %v1223 = vpop.f32.mrb[0].mxu0
        %1224 = vmatprep.mubr.f32.mxu0 0.0
        %1225 = vmatmul.mubr.f32.gmra.mrb[0].mxu0 %v1045
        %v1226 = vpop.f32.mrb[0].mxu0
        %v1227 = vadd.f32 0.0, %v1226
        %v1228 = vpop.f32.mrb[0].mxu0
        %1229 = vmatprep.mubr.f32.mxu0 0.0
        %1230 = vmatmul.mubr.f32.gmra.mrb[0].mxu0 %v1048
        %v1231 = vpop.f32.mrb[0].mxu0
        %v1232 = vadd.f32 0.0, %v1231
        %v1233 = vpop.f32.mrb[0].mxu0
        %1234 = vmatprep.mubr.f32.mxu0 0.0
        %1235 = vmatmul.mubr.f32.gmra.mrb[0].mxu0 %v1051
        %v1236 = vpop.f32.mrb[0].mxu0
        %v1237 = vadd.f32 0.0, %v1236
        %v1238 = vpop.f32.mrb[0].mxu0
        %1239 = vmatprep.mubr.f32.mxu0 0.0
        %1240 = vmatmul.mubr.f32.gmra.mrb[0].mxu0 %v1054
        %v1241 = vpop.f32.mrb[0].mxu0
        %v1242 = vadd.f32 0.0, %v1241
        %v1243 = vpop.f32.mrb[0].mxu0
        %1244 = vmatprep.mubr.f32.mxu0 0.0
        %1245 = vmatmul.mubr.f32.gmra.mrb[0].mxu0 %v1057
        %v1246 = vpop.f32.mrb[0].mxu0
        %v1247 = vadd.f32 0.0, %v1246
        %v1248 = vpop.f32.mrb[0].mxu0
        %1249 = vmatprep.mubr.f32.mxu0 0.0
        %1250 = vmatmul.mubr.f32.gmra.mrb[0].mxu0 %v1060
        %v1251 = vpop.f32.mrb[0].mxu0
        %v1252 = vadd.f32 0.0, %v1251
        %v1253 = vpop.f32.mrb[0].mxu0
        %1254 = vmatprep.mubr.f32.mxu0 0.0
        %1255 = vmatmul.mubr.f32.gmra.mrb[0].mxu0 %v1063
        %v1256 = vpop.f32.mrb[0].mxu0
        %v1257 = vadd.f32 0.0, %v1256
        %v1258 = vpop.f32.mrb[0].mxu0
        %1259 = vmatprep.mubr.f32.mxu0 0.0
        %1260 = vmatmul.mubr.f32.gmra.mrb[0].mxu0 %v1066
        %v1261 = vpop.f32.mrb[0].mxu0
        %v1262 = vadd.f32 0.0, %v1261
        %v1263 = vpop.f32.mrb[0].mxu0
        %1264 = vmatprep.mubr.f32.mxu0 0.0
        %1265 = vmatmul.mubr.f32.gmra.mrb[0].mxu0 %v1069
        %v1266 = vpop.f32.mrb[0].mxu0
        %v1267 = vadd.f32 0.0, %v1266
        %v1268 = vpop.f32.mrb[0].mxu0
        %1269 = vmatprep.mubr.f32.mxu0 0.0
        %1270 = vmatmul.mubr.f32.gmra.mrb[0].mxu0 %v1072
        %v1271 = vpop.f32.mrb[0].mxu0
        %v1272 = vadd.f32 0.0, %v1271
        %v1273 = vpop.f32.mrb[0].mxu0
        %1274 = vmatprep.mubr.f32.mxu0 0.0
        %1275 = vmatmul.mubr.f32.gmra.mrb[0].mxu0 %v1075
        %v1276 = vpop.f32.mrb[0].mxu0
        %v1277 = vadd.f32 0.0, %v1276
        %v1278 = vpop.f32.mrb[0].mxu0
        %1279 = vmatprep.mubr.f32.mxu0 0.0
        %1280 = vmatmul.mubr.f32.gmra.mrb[0].mxu0 %v1078
        %v1281 = vpop.f32.mrb[0].mxu0
        %v1282 = vadd.f32 0.0, %v1281
        %v1283 = vpop.f32.mrb[0].mxu0
        %1284 = vmatprep.mubr.f32.mxu0 0.0
        %1285 = vmatmul.mubr.f32.gmra.mrb[0].mxu0 %v1081
        %v1286 = vpop.f32.mrb[0].mxu0
        %v1287 = vadd.f32 0.0, %v1286
        %v1288 = vpop.f32.mrb[0].mxu0
        %1289 = vmatprep.mubr.f32.mxu0 0.0
        %1290 = vmatmul.mubr.f32.gmra.mrb[0].mxu0 %v1084
        %v1291 = vpop.f32.mrb[0].mxu0
        %v1292 = vadd.f32 0.0, %v1291
        %v1293 = vpop.f32.mrb[0].mxu0
        %1294 = vmatprep.mubr.f32.mxu0 0.0
        %1295 = vmatmul.mubr.f32.gmra.mrb[0].mxu0 %v1087
        %v1296 = vpop.f32.mrb[0].mxu0
        %v1297 = vadd.f32 0.0, %v1296
        %v1298 = vpop.f32.mrb[0].mxu0
        %1299 = vmatprep.mubr.f32.mxu0 0.0
        %1300 = vmatmul.mubr.f32.gmra.mrb[0].mxu0 %v1090
        %v1301 = vpop.f32.mrb[0].mxu0
        %v1302 = vadd.f32 0.0, %v1301
        %v1303 = vpop.f32.mrb[0].mxu0
        %1304 = vmatprep.mubr.f32.mxu0 0.0
        %1305 = vmatmul.mubr.f32.gmra.mrb[0].mxu0 %v1093
        %v1306 = vpop.f32.mrb[0].mxu0
        %v1307 = vadd.f32 0.0, %v1306
        %v1308 = vpop.f32.mrb[0].mxu0
        %1309 = vmatprep.mubr.f32.mxu0 0.0
        %1310 = vmatmul.mubr.f32.gmra.mrb[0].mxu0 %v1096
        %v1311 = vpop.f32.mrb[0].mxu0
        %v1312 = vadd.f32 0.0, %v1311
        %v1313 = vpop.f32.mrb[0].mxu0
        %1314 = vmatprep.mubr.f32.mxu0 0.0
        %1315 = vmatmul.mubr.f32.gmra.mrb[0].mxu0 %v1099
        %v1316 = vpop.f32.mrb[0].mxu0
        %v1317 = vadd.f32 0.0, %v1316
        %v1318 = vpop.f32.mrb[0].mxu0
        %1319 = vmatprep.mubr.f32.mxu0 0.0
        %1320 = vmatmul.mubr.f32.gmra.mrb[0].mxu0 %v1102
        %v1321 = vpop.f32.mrb[0].mxu0
        %v1322 = vadd.f32 0.0, %v1321
        %v1323 = vpop.f32.mrb[0].mxu0
        %1324 = vmatprep.mubr.f32.mxu0 0.0
        %1325 = vmatmul.mubr.f32.gmra.mrb[0].mxu0 %v1105
        %v1326 = vpop.f32.mrb[0].mxu0
        %v1327 = vadd.f32 0.0, %v1326
        %v1328 = vpop.f32.mrb[0].mxu0
        %1329 = vmatprep.mubr.f32.mxu0 0.0
        %1330 = vmatmul.mubr.f32.gmra.mrb[0].mxu0 %v1108
        %v1331 = vpop.f32.mrb[0].mxu0
        %v1332 = vadd.f32 0.0, %v1331
        %v1333 = vpop.f32.mrb[0].mxu0
        %1334 = vdwg.mxu0
        %v1335 = vadd.f32 %v1177, %v1217
        %v1336 = vadd.f32 %v1182, %v1222
        %v1337 = vadd.f32 %v1187, %v1227
        %v1338 = vadd.f32 %v1192, %v1232
        %v1339 = vadd.f32 %v1197, %v1237
        %v1340 = vadd.f32 %v1202, %v1242
        %v1341 = vadd.f32 %v1207, %v1247
        %v1342 = vadd.f32 %v1212, %v1252
        %v1343 = vsub.f32 %v1177, %v1217
        %v1344 = vsub.f32 %v1182, %v1222
        %v1345 = vsub.f32 %v1187, %v1227
        %v1346 = vsub.f32 %v1192, %v1232
        %v1347 = vsub.f32 %v1197, %v1237
        %v1348 = vsub.f32 %v1202, %v1242
        %v1349 = vsub.f32 %v1207, %v1247
        %v1350 = vsub.f32 %v1212, %v1252
        %v1351 = vadd.f32 %v1257, %v1297
        %v1352 = vadd.f32 %v1262, %v1302
        %v1353 = vadd.f32 %v1267, %v1307
        %v1354 = vadd.f32 %v1272, %v1312
        %v1355 = vadd.f32 %v1277, %v1317
        %v1356 = vadd.f32 %v1282, %v1322
        %v1357 = vadd.f32 %v1287, %v1327
        %v1358 = vadd.f32 %v1292, %v1332
        %v1359 = vsub.f32 %v1257, %v1297
        %v1360 = vsub.f32 %v1262, %v1302
        %v1361 = vsub.f32 %v1267, %v1307
        %v1362 = vsub.f32 %v1272, %v1312
        %v1363 = vsub.f32 %v1277, %v1317
        %v1364 = vsub.f32 %v1282, %v1322
        %v1365 = vsub.f32 %v1287, %v1327
        %v1366 = vsub.f32 %v1292, %v1332
        %v1367 = vsub.f32 %v1335, %v1351
        %v1368 = vsub.f32 %v1336, %v1352
        %v1369 = vsub.f32 %v1337, %v1353
        %v1370 = vsub.f32 %v1338, %v1354
        %v1371 = vsub.f32 %v1339, %v1355
        %v1372 = vsub.f32 %v1340, %v1356
        %v1373 = vsub.f32 %v1341, %v1357
        %v1374 = vsub.f32 %v1342, %v1358
        %v1375 = vmax.f32 %v956, %v1367
        %v1376 = vmax.f32 %v957, %v1368
        %v1377 = vmax.f32 %v958, %v1369
        %v1378 = vmax.f32 %v959, %v1370
        %v1379 = vmax.f32 %v960, %v1371
        %v1380 = vmax.f32 %v961, %v1372
        %v1381 = vmax.f32 %v962, %v1373
        %v1382 = vmax.f32 %v963, %v1374
        %v1383 = vadd.f32 %v1343, %v1359
        %v1384 = vadd.f32 %v1344, %v1360
        %v1385 = vadd.f32 %v1345, %v1361
        %v1386 = vadd.f32 %v1346, %v1362
        %v1387 = vadd.f32 %v1347, %v1363
        %v1388 = vadd.f32 %v1348, %v1364
        %v1389 = vadd.f32 %v1349, %v1365
        %v1390 = vadd.f32 %v1350, %v1366
        %v1391 = vmax.f32 %v964, %v1383
        %v1392 = vmax.f32 %v965, %v1384
        %v1393 = vmax.f32 %v966, %v1385
        %v1394 = vmax.f32 %v967, %v1386
        %v1395 = vmax.f32 %v968, %v1387
        %v1396 = vmax.f32 %v969, %v1388
        %v1397 = vmax.f32 %v970, %v1389
        %v1398 = vmax.f32 %v971, %v1390
        %v1399 = vsub.f32 %v1343, %v1359
        %v1400 = vsub.f32 %v1344, %v1360
        %v1401 = vsub.f32 %v1345, %v1361
        %v1402 = vsub.f32 %v1346, %v1362
        %v1403 = vsub.f32 %v1347, %v1363
        %v1404 = vsub.f32 %v1348, %v1364
        %v1405 = vsub.f32 %v1349, %v1365
        %v1406 = vsub.f32 %v1350, %v1366
        %v1407 = vmax.f32 %v972, %v1399
        %v1408 = vmax.f32 %v973, %v1400
        %v1409 = vmax.f32 %v974, %v1401
        %v1410 = vmax.f32 %v975, %v1402
        %v1411 = vmax.f32 %v976, %v1403
        %v1412 = vmax.f32 %v977, %v1404
        %v1413 = vmax.f32 %v978, %v1405
        %v1414 = vmax.f32 %v979, %v1406
        %v1415 = vadd.f32 %v948, %v1375
        %v1416 = vadd.f32 %v949, %v1376
        %v1417 = vadd.f32 %v950, %v1377
        %v1418 = vadd.f32 %v951, %v1378
        %v1419 = vadd.f32 %v952, %v1379
        %v1420 = vadd.f32 %v953, %v1380
        %v1421 = vadd.f32 %v954, %v1381
        %v1422 = vadd.f32 %v955, %v1382
        %v1423 = vsub.f32 %v948, %v1375
        %v1424 = vsub.f32 %v949, %v1376
        %v1425 = vsub.f32 %v950, %v1377
        %v1426 = vsub.f32 %v951, %v1378
        %v1427 = vsub.f32 %v952, %v1379
        %v1428 = vsub.f32 %v953, %v1380
        %v1429 = vsub.f32 %v954, %v1381
        %v1430 = vsub.f32 %v955, %v1382
        %v1431 = vadd.f32 %v1391, %v1407
        %v1432 = vadd.f32 %v1392, %v1408
        %v1433 = vadd.f32 %v1393, %v1409
        %v1434 = vadd.f32 %v1394, %v1410
        %v1435 = vadd.f32 %v1395, %v1411
        %v1436 = vadd.f32 %v1396, %v1412
        %v1437 = vadd.f32 %v1397, %v1413
        %v1438 = vadd.f32 %v1398, %v1414
        %v1439 = vsub.f32 %v1391, %v1407
        %v1440 = vsub.f32 %v1392, %v1408
        %v1441 = vsub.f32 %v1393, %v1409
        %v1442 = vsub.f32 %v1394, %v1410
        %v1443 = vsub.f32 %v1395, %v1411
        %v1444 = vsub.f32 %v1396, %v1412
        %v1445 = vsub.f32 %v1397, %v1413
        %v1446 = vsub.f32 %v1398, %v1414
        %v1447 = vadd.f32 %v1415, %v1431
        %v1448 = vadd.f32 %v1416, %v1432
        %v1449 = vadd.f32 %v1417, %v1433
        %v1450 = vadd.f32 %v1418, %v1434
        %v1451 = vadd.f32 %v1419, %v1435
        %v1452 = vadd.f32 %v1420, %v1436
        %v1453 = vadd.f32 %v1421, %v1437
        %v1454 = vadd.f32 %v1422, %v1438
        %v1455 = vsub.f32 %v1415, %v1431
        %v1456 = vsub.f32 %v1416, %v1432
        %v1457 = vsub.f32 %v1417, %v1433
        %v1458 = vsub.f32 %v1418, %v1434
        %v1459 = vsub.f32 %v1419, %v1435
        %v1460 = vsub.f32 %v1420, %v1436
        %v1461 = vsub.f32 %v1421, %v1437
        %v1462 = vsub.f32 %v1422, %v1438
        %v1463 = vadd.f32 %v1423, %v1439
        %v1464 = vadd.f32 %v1424, %v1440
        %v1465 = vadd.f32 %v1425, %v1441
        %v1466 = vadd.f32 %v1426, %v1442
        %v1467 = vadd.f32 %v1427, %v1443
        %v1468 = vadd.f32 %v1428, %v1444
        %v1469 = vadd.f32 %v1429, %v1445
        %v1470 = vadd.f32 %v1430, %v1446
        %v1471 = vsub.f32 %v1423, %v1439
        %v1472 = vsub.f32 %v1424, %v1440
        %v1473 = vsub.f32 %v1425, %v1441
        %v1474 = vsub.f32 %v1426, %v1442
        %v1475 = vsub.f32 %v1427, %v1443
        %v1476 = vsub.f32 %v1428, %v1444
        %v1477 = vsub.f32 %v1429, %v1445
        %v1478 = vsub.f32 %v1430, %v1446
        %v1479 = vld [vmem:[%s4] sm:$0xf]
        %v1480 = vld [vmem:[%s522] sm:$0xff]
        %v1481 = vld [vmem:[%s522 + $0x8] sm:$0xff]
        %v1482 = vld [vmem:[%s522 + $0x10] sm:$0xff]
        %v1483 = vld [vmem:[%s522 + $0x18] sm:$0xff]
        %v1484 = vld [vmem:[%s522 + $0x20] sm:$0xff]
        %v1485 = vld [vmem:[%s522 + $0x28] sm:$0xff]
        %v1486 = vld [vmem:[%s522 + $0x30] sm:$0xff]
        %v1487 = vld [vmem:[%s522 + $0x38] sm:$0xff]
        %vm1488 = vcmask 31744
        %v1490 = vsel %vm1488, %v1447, 0
        %v1493 = vsel %vm1488, %v1448, 0
        %v1496 = vsel %vm1488, %v1449, 0
        %v1499 = vsel %vm1488, %v1450, 0
        %v1502 = vsel %vm1488, %v1451, 0
        %v1505 = vsel %vm1488, %v1452, 0
        %v1508 = vsel %vm1488, %v1453, 0
        %v1511 = vsel %vm1488, %v1454, 0
        %vm1513 = vcmask 1043456
        %v1515 = vsel %vm1513, %v1479, 0
        %1517 = vmatprep.subr.mxu0 0.0
        %1518 = vmatpush1.msra.mxu0 %v1515
        %1519 = vmatprep.subr.mxu0 0.0
        %1520 = vmatpush1.msra.mxu0 0.0
        %1521 = vmatprep.subr.mxu0 0.0
        %1522 = vmatpush1.msra.mxu0 0.0
        %1523 = vmatprep.subr.mxu0 0.0
        %1524 = vmatpush1.msra.mxu0 0.0
        %1525 = vmatprep.subr.mxu0 0.0
        %1526 = vmatpush1.msra.mxu0 0.0
        %1527 = vmatprep.subr.mxu0 0.0
        %1528 = vmatpush1.msra.mxu0 0.0
        %1529 = vmatprep.subr.mxu0 0.0
        %1530 = vmatpush1.msra.mxu0 0.0
        %1531 = vmatprep.subr.mxu0 0.0
        %1532 = vmatpush1.msra.mxu0 0.0
        %1533 = vmatprep.subr.mxu0 0.0
        %1534 = vmatpush1.msra.mxu0 0.0
        %1535 = vmatprep.subr.mxu0 0.0
        %1536 = vmatpush1.msra.mxu0 0.0
        %1537 = vmatprep.subr.mxu0 0.0
        %1538 = vmatpush1.msra.mxu0 0.0
        %1539 = vmatprep.subr.mxu0 0.0
        %1540 = vmatpush1.msra.mxu0 0.0
        %1541 = vmatprep.subr.mxu0 0.0
        %1542 = vmatpush1.msra.mxu0 0.0
        %1543 = vmatprep.subr.mxu0 0.0
        %1544 = vmatpush1.msra.mxu0 0.0
        %1545 = vmatprep.subr.mxu0 0.0
        %1546 = vmatpush1.msra.mxu0 0.0
        %1547 = vmatprep.subr.mxu0 0.0
        %1548 = vmatpush1.msra.mxu0 0.0
        %1549 = vmatprep.subr.mxu0 0.0
        %1550 = vmatpush1.msra.mxu0 0.0
        %1551 = vmatprep.subr.mxu0 0.0
        %1552 = vmatpush1.msra.mxu0 0.0
        %1553 = vmatprep.subr.mxu0 0.0
        %1554 = vmatpush1.msra.mxu0 0.0
        %1555 = vmatprep.subr.mxu0 0.0
        %1556 = vmatpush1.msra.mxu0 0.0
        %1557 = vmatprep.subr.mxu0 0.0
        %1558 = vmatpush1.msra.mxu0 0.0
        %1559 = vmatprep.subr.mxu0 0.0
        %1560 = vmatpush1.msra.mxu0 0.0
        %1561 = vmatprep.subr.mxu0 0.0
        %1562 = vmatpush1.msra.mxu0 0.0
        %1563 = vmatprep.subr.mxu0 0.0
        %1564 = vmatpush1.msra.mxu0 0.0
        %1565 = vmatprep.subr.mxu0 0.0
        %1566 = vmatpush1.msra.mxu0 0.0
        %1567 = vmatprep.subr.mxu0 0.0
        %1568 = vmatpush1.msra.mxu0 0.0
        %1569 = vmatprep.subr.mxu0 0.0
        %1570 = vmatpush1.msra.mxu0 0.0
        %1571 = vmatprep.subr.mxu0 0.0
        %1572 = vmatpush1.msra.mxu0 0.0
        %1573 = vmatprep.subr.mxu0 0.0
        %1574 = vmatpush1.msra.mxu0 0.0
        %1575 = vmatprep.subr.mxu0 0.0
        %1576 = vmatpush1.msra.mxu0 0.0
        %1577 = vmatprep.subr.mxu0 0.0
        %1578 = vmatpush1.msra.mxu0 0.0
        %1579 = vmatprep.subr.mxu0 0.0
        %1580 = vmatpush1.msra.mxu0 0.0
        %1581 = vmatprep.mubr.f32.mxu0 0.0
        %1582 = vmatmul.mubr.f32.gmra.mrb[0].mxu0 %v1490
        %v1583 = vpop.f32.mrb[0].mxu0
        %v1584 = vadd.f32 %v1480, %v1583
        %v1585 = vpop.f32.mrb[0].mxu0
        %1586 = vmatprep.mubr.f32.mxu0 0.0
        %1587 = vmatmul.mubr.f32.gmra.mrb[0].mxu0 %v1493
        %v1588 = vpop.f32.mrb[0].mxu0
        %v1589 = vadd.f32 %v1481, %v1588
        %v1590 = vpop.f32.mrb[0].mxu0
        %1591 = vmatprep.mubr.f32.mxu0 0.0
        %1592 = vmatmul.mubr.f32.gmra.mrb[0].mxu0 %v1496
        %v1593 = vpop.f32.mrb[0].mxu0
        %v1594 = vadd.f32 %v1482, %v1593
        %v1595 = vpop.f32.mrb[0].mxu0
        %1596 = vmatprep.mubr.f32.mxu0 0.0
        %1597 = vmatmul.mubr.f32.gmra.mrb[0].mxu0 %v1499
        %v1598 = vpop.f32.mrb[0].mxu0
        %v1599 = vadd.f32 %v1483, %v1598
        %v1600 = vpop.f32.mrb[0].mxu0
        %1601 = vmatprep.mubr.f32.mxu0 0.0
        %1602 = vmatmul.mubr.f32.gmra.mrb[0].mxu0 %v1502
        %v1603 = vpop.f32.mrb[0].mxu0
        %v1604 = vadd.f32 %v1484, %v1603
        %v1605 = vpop.f32.mrb[0].mxu0
        %1606 = vmatprep.mubr.f32.mxu0 0.0
        %1607 = vmatmul.mubr.f32.gmra.mrb[0].mxu0 %v1505
        %v1608 = vpop.f32.mrb[0].mxu0
        %v1609 = vadd.f32 %v1485, %v1608
        %v1610 = vpop.f32.mrb[0].mxu0
        %1611 = vmatprep.mubr.f32.mxu0 0.0
        %1612 = vmatmul.mubr.f32.gmra.mrb[0].mxu0 %v1508
        %v1613 = vpop.f32.mrb[0].mxu0
        %v1614 = vadd.f32 %v1486, %v1613
        %v1615 = vpop.f32.mrb[0].mxu0
        %1616 = vmatprep.mubr.f32.mxu0 0.0
        %1617 = vmatmul.mubr.f32.gmra.mrb[0].mxu0 %v1511
        %v1618 = vpop.f32.mrb[0].mxu0
        %v1619 = vadd.f32 %v1487, %v1618
        %v1620 = vpop.f32.mrb[0].mxu0
        %1621 = vdwg.mxu0
        %1622 = vst.msk [vmem:[%s556] sm:$0xff] %vm594, %v1584
        %1623 = vst.msk [vmem:[%s556 + $0x8] sm:$0xff] %vm594, %v1589
        %1624 = vst.msk [vmem:[%s556 + $0x10] sm:$0xff] %vm594, %v1594
        %1625 = vst.msk [vmem:[%s556 + $0x18] sm:$0xff] %vm594, %v1599
        %1626 = vst.msk [vmem:[%s556 + $0x20] sm:$0xff] %vm594, %v1604
        %1627 = vst.msk [vmem:[%s556 + $0x28] sm:$0xff] %vm594, %v1609
        %1628 = vst.msk [vmem:[%s556 + $0x30] sm:$0xff] %vm594, %v1614
        %1629 = vst.msk [vmem:[%s556 + $0x38] sm:$0xff] %vm594, %v1619
        %v1630 = vld [vmem:[%s4] sm:$0xf]
        %s1631 = scalar_lea.vmem %s522, 64 [#allocation2]
        %v1632 = vld [vmem:[%s1631] sm:$0xff]
        %v1633 = vld [vmem:[%s1631 + $0x8] sm:$0xff]
        %v1634 = vld [vmem:[%s1631 + $0x10] sm:$0xff]
        %v1635 = vld [vmem:[%s1631 + $0x18] sm:$0xff]
        %v1636 = vld [vmem:[%s1631 + $0x20] sm:$0xff]
        %v1637 = vld [vmem:[%s1631 + $0x28] sm:$0xff]
        %v1638 = vld [vmem:[%s1631 + $0x30] sm:$0xff]
        %v1639 = vld [vmem:[%s1631 + $0x38] sm:$0xff]
        %v1641 = vsel %vm1488, %v1455, 0
        %v1644 = vsel %vm1488, %v1456, 0
        %v1647 = vsel %vm1488, %v1457, 0
        %v1650 = vsel %vm1488, %v1458, 0
        %v1653 = vsel %vm1488, %v1459, 0
        %v1656 = vsel %vm1488, %v1460, 0
        %v1659 = vsel %vm1488, %v1461, 0
        %v1662 = vsel %vm1488, %v1462, 0
        %v1665 = vsel %vm1513, %v1630, 0
        %1667 = vmatprep.subr.mxu0 0.0
        %1668 = vmatpush1.msra.mxu0 %v1665
        %1669 = vmatprep.subr.mxu0 0.0
        %1670 = vmatpush1.msra.mxu0 0.0
        %1671 = vmatprep.subr.mxu0 0.0
        %1672 = vmatpush1.msra.mxu0 0.0
        %1673 = vmatprep.subr.mxu0 0.0
        %1674 = vmatpush1.msra.mxu0 0.0
        %1675 = vmatprep.subr.mxu0 0.0
        %1676 = vmatpush1.msra.mxu0 0.0
        %1677 = vmatprep.subr.mxu0 0.0
        %1678 = vmatpush1.msra.mxu0 0.0
        %1679 = vmatprep.subr.mxu0 0.0
        %1680 = vmatpush1.msra.mxu0 0.0
        %1681 = vmatprep.subr.mxu0 0.0
        %1682 = vmatpush1.msra.mxu0 0.0
        %1683 = vmatprep.subr.mxu0 0.0
        %1684 = vmatpush1.msra.mxu0 0.0
        %1685 = vmatprep.subr.mxu0 0.0
        %1686 = vmatpush1.msra.mxu0 0.0
        %1687 = vmatprep.subr.mxu0 0.0
        %1688 = vmatpush1.msra.mxu0 0.0
        %1689 = vmatprep.subr.mxu0 0.0
        %1690 = vmatpush1.msra.mxu0 0.0
        %1691 = vmatprep.subr.mxu0 0.0
        %1692 = vmatpush1.msra.mxu0 0.0
        %1693 = vmatprep.subr.mxu0 0.0
        %1694 = vmatpush1.msra.mxu0 0.0
        %1695 = vmatprep.subr.mxu0 0.0
        %1696 = vmatpush1.msra.mxu0 0.0
        %1697 = vmatprep.subr.mxu0 0.0
        %1698 = vmatpush1.msra.mxu0 0.0
        %1699 = vmatprep.subr.mxu0 0.0
        %1700 = vmatpush1.msra.mxu0 0.0
        %1701 = vmatprep.subr.mxu0 0.0
        %1702 = vmatpush1.msra.mxu0 0.0
        %1703 = vmatprep.subr.mxu0 0.0
        %1704 = vmatpush1.msra.mxu0 0.0
        %1705 = vmatprep.subr.mxu0 0.0
        %1706 = vmatpush1.msra.mxu0 0.0
        %1707 = vmatprep.subr.mxu0 0.0
        %1708 = vmatpush1.msra.mxu0 0.0
        %1709 = vmatprep.subr.mxu0 0.0
        %1710 = vmatpush1.msra.mxu0 0.0
        %1711 = vmatprep.subr.mxu0 0.0
        %1712 = vmatpush1.msra.mxu0 0.0
        %1713 = vmatprep.subr.mxu0 0.0
        %1714 = vmatpush1.msra.mxu0 0.0
        %1715 = vmatprep.subr.mxu0 0.0
        %1716 = vmatpush1.msra.mxu0 0.0
        %1717 = vmatprep.subr.mxu0 0.0
        %1718 = vmatpush1.msra.mxu0 0.0
        %1719 = vmatprep.subr.mxu0 0.0
        %1720 = vmatpush1.msra.mxu0 0.0
        %1721 = vmatprep.subr.mxu0 0.0
        %1722 = vmatpush1.msra.mxu0 0.0
        %1723 = vmatprep.subr.mxu0 0.0
        %1724 = vmatpush1.msra.mxu0 0.0
        %1725 = vmatprep.subr.mxu0 0.0
        %1726 = vmatpush1.msra.mxu0 0.0
        %1727 = vmatprep.subr.mxu0 0.0
        %1728 = vmatpush1.msra.mxu0 0.0
        %1729 = vmatprep.subr.mxu0 0.0
        %1730 = vmatpush1.msra.mxu0 0.0
        %1731 = vmatprep.mubr.f32.mxu0 0.0
        %1732 = vmatmul.mubr.f32.gmra.mrb[0].mxu0 %v1641
        %v1733 = vpop.f32.mrb[0].mxu0
        %v1734 = vadd.f32 %v1632, %v1733
        %v1735 = vpop.f32.mrb[0].mxu0
        %1736 = vmatprep.mubr.f32.mxu0 0.0
        %1737 = vmatmul.mubr.f32.gmra.mrb[0].mxu0 %v1644
        %v1738 = vpop.f32.mrb[0].mxu0
        %v1739 = vadd.f32 %v1633, %v1738
        %v1740 = vpop.f32.mrb[0].mxu0
        %1741 = vmatprep.mubr.f32.mxu0 0.0
        %1742 = vmatmul.mubr.f32.gmra.mrb[0].mxu0 %v1647
        %v1743 = vpop.f32.mrb[0].mxu0
        %v1744 = vadd.f32 %v1634, %v1743
        %v1745 = vpop.f32.mrb[0].mxu0
        %1746 = vmatprep.mubr.f32.mxu0 0.0
        %1747 = vmatmul.mubr.f32.gmra.mrb[0].mxu0 %v1650
        %v1748 = vpop.f32.mrb[0].mxu0
        %v1749 = vadd.f32 %v1635, %v1748
        %v1750 = vpop.f32.mrb[0].mxu0
        %1751 = vmatprep.mubr.f32.mxu0 0.0
        %1752 = vmatmul.mubr.f32.gmra.mrb[0].mxu0 %v1653
        %v1753 = vpop.f32.mrb[0].mxu0
        %v1754 = vadd.f32 %v1636, %v1753
        %v1755 = vpop.f32.mrb[0].mxu0
        %1756 = vmatprep.mubr.f32.mxu0 0.0
        %1757 = vmatmul.mubr.f32.gmra.mrb[0].mxu0 %v1656
        %v1758 = vpop.f32.mrb[0].mxu0
        %v1759 = vadd.f32 %v1637, %v1758
        %v1760 = vpop.f32.mrb[0].mxu0
        %1761 = vmatprep.mubr.f32.mxu0 0.0
        %1762 = vmatmul.mubr.f32.gmra.mrb[0].mxu0 %v1659
        %v1763 = vpop.f32.mrb[0].mxu0
        %v1764 = vadd.f32 %v1638, %v1763
        %v1765 = vpop.f32.mrb[0].mxu0
        %1766 = vmatprep.mubr.f32.mxu0 0.0
        %1767 = vmatmul.mubr.f32.gmra.mrb[0].mxu0 %v1662
        %v1768 = vpop.f32.mrb[0].mxu0
        %v1769 = vadd.f32 %v1639, %v1768
        %v1770 = vpop.f32.mrb[0].mxu0
        %1771 = vdwg.mxu0
        %s1772 = scalar_lea.vmem %s556, 64 [#allocation4]
        %1773 = vst.msk [vmem:[%s1772] sm:$0xff] %vm594, %v1734
        %1774 = vst.msk [vmem:[%s1772 + $0x8] sm:$0xff] %vm594, %v1739
        %1775 = vst.msk [vmem:[%s1772 + $0x10] sm:$0xff] %vm594, %v1744
        %1776 = vst.msk [vmem:[%s1772 + $0x18] sm:$0xff] %vm594, %v1749
        %1777 = vst.msk [vmem:[%s1772 + $0x20] sm:$0xff] %vm594, %v1754
        %1778 = vst.msk [vmem:[%s1772 + $0x28] sm:$0xff] %vm594, %v1759
        %1779 = vst.msk [vmem:[%s1772 + $0x30] sm:$0xff] %vm594, %v1764
        %1780 = vst.msk [vmem:[%s1772 + $0x38] sm:$0xff] %vm594, %v1769
        %v1781 = vld [vmem:[%s4] sm:$0xf]
        %s1782 = scalar_lea.vmem %s522, 128 [#allocation2]
        %v1783 = vld [vmem:[%s1782] sm:$0xff]
        %v1784 = vld [vmem:[%s1782 + $0x8] sm:$0xff]
        %v1785 = vld [vmem:[%s1782 + $0x10] sm:$0xff]
        %v1786 = vld [vmem:[%s1782 + $0x18] sm:$0xff]
        %v1787 = vld [vmem:[%s1782 + $0x20] sm:$0xff]
        %v1788 = vld [vmem:[%s1782 + $0x28] sm:$0xff]
        %v1789 = vld [vmem:[%s1782 + $0x30] sm:$0xff]
        %v1790 = vld [vmem:[%s1782 + $0x38] sm:$0xff]
        %v1792 = vsel %vm1488, %v1463, 0
        %v1795 = vsel %vm1488, %v1464, 0
        %v1798 = vsel %vm1488, %v1465, 0
        %v1801 = vsel %vm1488, %v1466, 0
        %v1804 = vsel %vm1488, %v1467, 0
        %v1807 = vsel %vm1488, %v1468, 0
        %v1810 = vsel %vm1488, %v1469, 0
        %v1813 = vsel %vm1488, %v1470, 0
        %v1816 = vsel %vm1513, %v1781, 0
        %1818 = vmatprep.subr.mxu0 0.0
        %1819 = vmatpush1.msra.mxu0 %v1816
        %1820 = vmatprep.subr.mxu0 0.0
        %1821 = vmatpush1.msra.mxu0 0.0
        %1822 = vmatprep.subr.mxu0 0.0
        %1823 = vmatpush1.msra.mxu0 0.0
        %1824 = vmatprep.subr.mxu0 0.0
        %1825 = vmatpush1.msra.mxu0 0.0
        %1826 = vmatprep.subr.mxu0 0.0
        %1827 = vmatpush1.msra.mxu0 0.0
        %1828 = vmatprep.subr.mxu0 0.0
        %1829 = vmatpush1.msra.mxu0 0.0
        %1830 = vmatprep.subr.mxu0 0.0
        %1831 = vmatpush1.msra.mxu0 0.0
        %1832 = vmatprep.subr.mxu0 0.0
        %1833 = vmatpush1.msra.mxu0 0.0
        %1834 = vmatprep.subr.mxu0 0.0
        %1835 = vmatpush1.msra.mxu0 0.0
        %1836 = vmatprep.subr.mxu0 0.0
        %1837 = vmatpush1.msra.mxu0 0.0
        %1838 = vmatprep.subr.mxu0 0.0
        %1839 = vmatpush1.msra.mxu0 0.0
        %1840 = vmatprep.subr.mxu0 0.0
        %1841 = vmatpush1.msra.mxu0 0.0
        %1842 = vmatprep.subr.mxu0 0.0
        %1843 = vmatpush1.msra.mxu0 0.0
        %1844 = vmatprep.subr.mxu0 0.0
        %1845 = vmatpush1.msra.mxu0 0.0
        %1846 = vmatprep.subr.mxu0 0.0
        %1847 = vmatpush1.msra.mxu0 0.0
        %1848 = vmatprep.subr.mxu0 0.0
        %1849 = vmatpush1.msra.mxu0 0.0
        %1850 = vmatprep.subr.mxu0 0.0
        %1851 = vmatpush1.msra.mxu0 0.0
        %1852 = vmatprep.subr.mxu0 0.0
        %1853 = vmatpush1.msra.mxu0 0.0
        %1854 = vmatprep.subr.mxu0 0.0
        %1855 = vmatpush1.msra.mxu0 0.0
        %1856 = vmatprep.subr.mxu0 0.0
        %1857 = vmatpush1.msra.mxu0 0.0
        %1858 = vmatprep.subr.mxu0 0.0
        %1859 = vmatpush1.msra.mxu0 0.0
        %1860 = vmatprep.subr.mxu0 0.0
        %1861 = vmatpush1.msra.mxu0 0.0
        %1862 = vmatprep.subr.mxu0 0.0
        %1863 = vmatpush1.msra.mxu0 0.0
        %1864 = vmatprep.subr.mxu0 0.0
        %1865 = vmatpush1.msra.mxu0 0.0
        %1866 = vmatprep.subr.mxu0 0.0
        %1867 = vmatpush1.msra.mxu0 0.0
        %1868 = vmatprep.subr.mxu0 0.0
        %1869 = vmatpush1.msra.mxu0 0.0
        %1870 = vmatprep.subr.mxu0 0.0
        %1871 = vmatpush1.msra.mxu0 0.0
        %1872 = vmatprep.subr.mxu0 0.0
        %1873 = vmatpush1.msra.mxu0 0.0
        %1874 = vmatprep.subr.mxu0 0.0
        %1875 = vmatpush1.msra.mxu0 0.0
        %1876 = vmatprep.subr.mxu0 0.0
        %1877 = vmatpush1.msra.mxu0 0.0
        %1878 = vmatprep.subr.mxu0 0.0
        %1879 = vmatpush1.msra.mxu0 0.0
        %1880 = vmatprep.subr.mxu0 0.0
        %1881 = vmatpush1.msra.mxu0 0.0
        %1882 = vmatprep.mubr.f32.mxu0 0.0
        %1883 = vmatmul.mubr.f32.gmra.mrb[0].mxu0 %v1792
        %v1884 = vpop.f32.mrb[0].mxu0
        %v1885 = vadd.f32 %v1783, %v1884
        %v1886 = vpop.f32.mrb[0].mxu0
        %1887 = vmatprep.mubr.f32.mxu0 0.0
        %1888 = vmatmul.mubr.f32.gmra.mrb[0].mxu0 %v1795
        %v1889 = vpop.f32.mrb[0].mxu0
        %v1890 = vadd.f32 %v1784, %v1889
        %v1891 = vpop.f32.mrb[0].mxu0
        %1892 = vmatprep.mubr.f32.mxu0 0.0
        %1893 = vmatmul.mubr.f32.gmra.mrb[0].mxu0 %v1798
        %v1894 = vpop.f32.mrb[0].mxu0
        %v1895 = vadd.f32 %v1785, %v1894
        %v1896 = vpop.f32.mrb[0].mxu0
        %1897 = vmatprep.mubr.f32.mxu0 0.0
        %1898 = vmatmul.mubr.f32.gmra.mrb[0].mxu0 %v1801
        %v1899 = vpop.f32.mrb[0].mxu0
        %v1900 = vadd.f32 %v1786, %v1899
        %v1901 = vpop.f32.mrb[0].mxu0
        %1902 = vmatprep.mubr.f32.mxu0 0.0
        %1903 = vmatmul.mubr.f32.gmra.mrb[0].mxu0 %v1804
        %v1904 = vpop.f32.mrb[0].mxu0
        %v1905 = vadd.f32 %v1787, %v1904
        %v1906 = vpop.f32.mrb[0].mxu0
        %1907 = vmatprep.mubr.f32.mxu0 0.0
        %1908 = vmatmul.mubr.f32.gmra.mrb[0].mxu0 %v1807
        %v1909 = vpop.f32.mrb[0].mxu0
        %v1910 = vadd.f32 %v1788, %v1909
        %v1911 = vpop.f32.mrb[0].mxu0
        %1912 = vmatprep.mubr.f32.mxu0 0.0
        %1913 = vmatmul.mubr.f32.gmra.mrb[0].mxu0 %v1810
        %v1914 = vpop.f32.mrb[0].mxu0
        %v1915 = vadd.f32 %v1789, %v1914
        %v1916 = vpop.f32.mrb[0].mxu0
        %1917 = vmatprep.mubr.f32.mxu0 0.0
        %1918 = vmatmul.mubr.f32.gmra.mrb[0].mxu0 %v1813
        %v1919 = vpop.f32.mrb[0].mxu0
        %v1920 = vadd.f32 %v1790, %v1919
        %v1921 = vpop.f32.mrb[0].mxu0
        %1922 = vdwg.mxu0
        %s1923 = scalar_lea.vmem %s556, 128 [#allocation4]
        %1924 = vst.msk [vmem:[%s1923] sm:$0xff] %vm594, %v1885
        %1925 = vst.msk [vmem:[%s1923 + $0x8] sm:$0xff] %vm594, %v1890
        %1926 = vst.msk [vmem:[%s1923 + $0x10] sm:$0xff] %vm594, %v1895
        %1927 = vst.msk [vmem:[%s1923 + $0x18] sm:$0xff] %vm594, %v1900
        %1928 = vst.msk [vmem:[%s1923 + $0x20] sm:$0xff] %vm594, %v1905
        %1929 = vst.msk [vmem:[%s1923 + $0x28] sm:$0xff] %vm594, %v1910
        %1930 = vst.msk [vmem:[%s1923 + $0x30] sm:$0xff] %vm594, %v1915
        %1931 = vst.msk [vmem:[%s1923 + $0x38] sm:$0xff] %vm594, %v1920
        %v1932 = vld [vmem:[%s4] sm:$0xf]
        %s1933 = scalar_lea.vmem %s522, 192 [#allocation2]
        %v1934 = vld [vmem:[%s1933] sm:$0xff]
        %v1935 = vld [vmem:[%s1933 + $0x8] sm:$0xff]
        %v1936 = vld [vmem:[%s1933 + $0x10] sm:$0xff]
        %v1937 = vld [vmem:[%s1933 + $0x18] sm:$0xff]
        %v1938 = vld [vmem:[%s1933 + $0x20] sm:$0xff]
        %v1939 = vld [vmem:[%s1933 + $0x28] sm:$0xff]
        %v1940 = vld [vmem:[%s1933 + $0x30] sm:$0xff]
        %v1941 = vld [vmem:[%s1933 + $0x38] sm:$0xff]
        %v1943 = vsel %vm1488, %v1471, 0
        %v1946 = vsel %vm1488, %v1472, 0
        %v1949 = vsel %vm1488, %v1473, 0
        %v1952 = vsel %vm1488, %v1474, 0
        %v1955 = vsel %vm1488, %v1475, 0
        %v1958 = vsel %vm1488, %v1476, 0
        %v1961 = vsel %vm1488, %v1477, 0
        %v1964 = vsel %vm1488, %v1478, 0
        %v1967 = vsel %vm1513, %v1932, 0
        %1969 = vmatprep.subr.mxu0 0.0
        %1970 = vmatpush1.msra.mxu0 %v1967
        %1971 = vmatprep.subr.mxu0 0.0
        %1972 = vmatpush1.msra.mxu0 0.0
        %1973 = vmatprep.subr.mxu0 0.0
        %1974 = vmatpush1.msra.mxu0 0.0
        %1975 = vmatprep.subr.mxu0 0.0
        %1976 = vmatpush1.msra.mxu0 0.0
        %1977 = vmatprep.subr.mxu0 0.0
        %1978 = vmatpush1.msra.mxu0 0.0
        %1979 = vmatprep.subr.mxu0 0.0
        %1980 = vmatpush1.msra.mxu0 0.0
        %1981 = vmatprep.subr.mxu0 0.0
        %1982 = vmatpush1.msra.mxu0 0.0
        %1983 = vmatprep.subr.mxu0 0.0
        %1984 = vmatpush1.msra.mxu0 0.0
        %1985 = vmatprep.subr.mxu0 0.0
        %1986 = vmatpush1.msra.mxu0 0.0
        %1987 = vmatprep.subr.mxu0 0.0
        %1988 = vmatpush1.msra.mxu0 0.0
        %1989 = vmatprep.subr.mxu0 0.0
        %1990 = vmatpush1.msra.mxu0 0.0
        %1991 = vmatprep.subr.mxu0 0.0
        %1992 = vmatpush1.msra.mxu0 0.0
        %1993 = vmatprep.subr.mxu0 0.0
        %1994 = vmatpush1.msra.mxu0 0.0
        %1995 = vmatprep.subr.mxu0 0.0
        %1996 = vmatpush1.msra.mxu0 0.0
        %1997 = vmatprep.subr.mxu0 0.0
        %1998 = vmatpush1.msra.mxu0 0.0
        %1999 = vmatprep.subr.mxu0 0.0
        %2000 = vmatpush1.msra.mxu0 0.0
        %2001 = vmatprep.subr.mxu0 0.0
        %2002 = vmatpush1.msra.mxu0 0.0
        %2003 = vmatprep.subr.mxu0 0.0
        %2004 = vmatpush1.msra.mxu0 0.0
        %2005 = vmatprep.subr.mxu0 0.0
        %2006 = vmatpush1.msra.mxu0 0.0
        %2007 = vmatprep.subr.mxu0 0.0
        %2008 = vmatpush1.msra.mxu0 0.0
        %2009 = vmatprep.subr.mxu0 0.0
        %2010 = vmatpush1.msra.mxu0 0.0
        %2011 = vmatprep.subr.mxu0 0.0
        %2012 = vmatpush1.msra.mxu0 0.0
        %2013 = vmatprep.subr.mxu0 0.0
        %2014 = vmatpush1.msra.mxu0 0.0
        %2015 = vmatprep.subr.mxu0 0.0
        %2016 = vmatpush1.msra.mxu0 0.0
        %2017 = vmatprep.subr.mxu0 0.0
        %2018 = vmatpush1.msra.mxu0 0.0
        %2019 = vmatprep.subr.mxu0 0.0
        %2020 = vmatpush1.msra.mxu0 0.0
        %2021 = vmatprep.subr.mxu0 0.0
        %2022 = vmatpush1.msra.mxu0 0.0
        %2023 = vmatprep.subr.mxu0 0.0
        %2024 = vmatpush1.msra.mxu0 0.0
        %2025 = vmatprep.subr.mxu0 0.0
        %2026 = vmatpush1.msra.mxu0 0.0
        %2027 = vmatprep.subr.mxu0 0.0
        %2028 = vmatpush1.msra.mxu0 0.0
        %2029 = vmatprep.subr.mxu0 0.0
        %2030 = vmatpush1.msra.mxu0 0.0
        %2031 = vmatprep.subr.mxu0 0.0
        %2032 = vmatpush1.msra.mxu0 0.0
        %2033 = vmatprep.mubr.f32.mxu0 0.0
        %2034 = vmatmul.mubr.f32.gmra.mrb[0].mxu0 %v1943
        %v2035 = vpop.f32.mrb[0].mxu0
        %v2036 = vadd.f32 %v1934, %v2035
        %v2037 = vpop.f32.mrb[0].mxu0
        %2038 = vmatprep.mubr.f32.mxu0 0.0
        %2039 = vmatmul.mubr.f32.gmra.mrb[0].mxu0 %v1946
        %v2040 = vpop.f32.mrb[0].mxu0
        %v2041 = vadd.f32 %v1935, %v2040
        %v2042 = vpop.f32.mrb[0].mxu0
        %2043 = vmatprep.mubr.f32.mxu0 0.0
        %2044 = vmatmul.mubr.f32.gmra.mrb[0].mxu0 %v1949
        %v2045 = vpop.f32.mrb[0].mxu0
        %v2046 = vadd.f32 %v1936, %v2045
        %v2047 = vpop.f32.mrb[0].mxu0
        %2048 = vmatprep.mubr.f32.mxu0 0.0
        %2049 = vmatmul.mubr.f32.gmra.mrb[0].mxu0 %v1952
        %v2050 = vpop.f32.mrb[0].mxu0
        %v2051 = vadd.f32 %v1937, %v2050
        %v2052 = vpop.f32.mrb[0].mxu0
        %2053 = vmatprep.mubr.f32.mxu0 0.0
        %2054 = vmatmul.mubr.f32.gmra.mrb[0].mxu0 %v1955
        %v2055 = vpop.f32.mrb[0].mxu0
        %v2056 = vadd.f32 %v1938, %v2055
        %v2057 = vpop.f32.mrb[0].mxu0
        %2058 = vmatprep.mubr.f32.mxu0 0.0
        %2059 = vmatmul.mubr.f32.gmra.mrb[0].mxu0 %v1958
        %v2060 = vpop.f32.mrb[0].mxu0
        %v2061 = vadd.f32 %v1939, %v2060
        %v2062 = vpop.f32.mrb[0].mxu0
        %2063 = vmatprep.mubr.f32.mxu0 0.0
        %2064 = vmatmul.mubr.f32.gmra.mrb[0].mxu0 %v1961
        %v2065 = vpop.f32.mrb[0].mxu0
        %v2066 = vadd.f32 %v1940, %v2065
        %v2067 = vpop.f32.mrb[0].mxu0
        %2068 = vmatprep.mubr.f32.mxu0 0.0
        %2069 = vmatmul.mubr.f32.gmra.mrb[0].mxu0 %v1964
        %v2070 = vpop.f32.mrb[0].mxu0
        %v2071 = vadd.f32 %v1941, %v2070
        %v2072 = vpop.f32.mrb[0].mxu0
        %2073 = vdwg.mxu0
        %s2074 = scalar_lea.vmem %s556, 192 [#allocation4]
        %2075 = vst.msk [vmem:[%s2074] sm:$0xff] %vm594, %v2036
        %2076 = vst.msk [vmem:[%s2074 + $0x8] sm:$0xff] %vm594, %v2041
        %2077 = vst.msk [vmem:[%s2074 + $0x10] sm:$0xff] %vm594, %v2046
        %2078 = vst.msk [vmem:[%s2074 + $0x18] sm:$0xff] %vm594, %v2051
        %2079 = vst.msk [vmem:[%s2074 + $0x20] sm:$0xff] %vm594, %v2056
        %2080 = vst.msk [vmem:[%s2074 + $0x28] sm:$0xff] %vm594, %v2061
        %2081 = vst.msk [vmem:[%s2074 + $0x30] sm:$0xff] %vm594, %v2066
        %2082 = vst.msk [vmem:[%s2074 + $0x38] sm:$0xff] %vm594, %v2071
        %s2083 = sand.u32 %s139, 1
        %s2084 = sand.u32 %s139, 1
        %s2085 = smul.addr %s2084, 256
        %s2086 = scalar_lea.vmem [#allocation4], %s2085
        // Predicated region
        $region117: #{_lambda_.1} parent=107 // pred_check
          %p2087 = pneg %p149
        $region118: #{_lambda_.1} parent=107 // pred_check_branch
          %2089 = sbr.rel (%p2087) target = $region120
        $region119: #{_lambda_.1} parent=107 // pred_region
          %s2090 = smul.u32 8, %s16
          %s2091 = smul.addr %s2090, 8
          %s2092 = scalar_lea.vmem %s5, %s2091
          // Predicated region
          $region121: #{_lambda_.1} parent=119 // pred_check
            _
          $region122: #{_lambda_.1} parent=119 // pred_check_branch
            %2094 = sbr.rel (0) target = $region124
          $region123: #{_lambda_.1} parent=119 // pred_region
            // Predicated region
            $region125: #{_lambda_.1} parent=123 // pred_check
              _
            $region126: #{_lambda_.1} parent=123 // pred_check_branch
              %2096 = sbr.rel (0) target = $region128
            $region127: #{_lambda_.1} parent=123 // pred_region
              // Predicated region
              $region140: #{_lambda_.1} parent=127 // pred_check
                _
              $region141: #{_lambda_.1} parent=127 // pred_check_branch
                %2173 = sbr.rel (0) target = $region143
              $region142: #{_lambda_.1} parent=127 // pred_region
                loop: start=0, step=1, limit=1
                $region144: #{_lambda_.1} parent=142 // loop_pre_header
                  _
                $region145: #{_lambda_.1} parent=142 // loop_header
                  %s2175 = sphi 0, %s2179
                  %p2176 = scmp.ge.s32.totalorder %s2175, 1
                  %s2180 = sphi %s2086, %s2086
                  %s2181 = sphi %s2092, %s2092
                $region146: #{_lambda_.1} parent=142 // loop_header_branch
                  %2178 = sbr.rel (%p2176) target = $region150
                $region147: #{_lambda_.1} parent=142 // loop_body
                  %v2182 = vld [vmem:[%s2180] sm:$0xff]
                  %2183 = vst [vmem:[%s2181] sm:$0xff] %v2182
                  %v2184 = vld [vmem:[%s2180 + $0x8] sm:$0xff]
                  %2185 = vst [vmem:[%s2181 + $0x8] sm:$0xff] %v2184
                  %v2186 = vld [vmem:[%s2180 + $0x10] sm:$0xff]
                  %2187 = vst [vmem:[%s2181 + $0x10] sm:$0xff] %v2186
                  %v2188 = vld [vmem:[%s2180 + $0x18] sm:$0xff]
                  %2189 = vst [vmem:[%s2181 + $0x18] sm:$0xff] %v2188
                  %v2190 = vld [vmem:[%s2180 + $0x20] sm:$0xff]
                  %2191 = vst [vmem:[%s2181 + $0x20] sm:$0xff] %v2190
                  %v2192 = vld [vmem:[%s2180 + $0x28] sm:$0xff]
                  %2193 = vst [vmem:[%s2181 + $0x28] sm:$0xff] %v2192
                  %v2194 = vld [vmem:[%s2180 + $0x30] sm:$0xff]
                  %2195 = vst [vmem:[%s2181 + $0x30] sm:$0xff] %v2194
                  %v2196 = vld [vmem:[%s2180 + $0x38] sm:$0xff]
                  %2197 = vst [vmem:[%s2181 + $0x38] sm:$0xff] %v2196
                  %v2198 = vld [vmem:[%s2180 + $0x40] sm:$0xff]
                  %2199 = vst [vmem:[%s2181 + $0x80] sm:$0xff] %v2198
                  %v2200 = vld [vmem:[%s2180 + $0x48] sm:$0xff]
                  %2201 = vst [vmem:[%s2181 + $0x88] sm:$0xff] %v2200
                  %v2202 = vld [vmem:[%s2180 + $0x50] sm:$0xff]
                  %2203 = vst [vmem:[%s2181 + $0x90] sm:$0xff] %v2202
                  %v2204 = vld [vmem:[%s2180 + $0x58] sm:$0xff]
                  %2205 = vst [vmem:[%s2181 + $0x98] sm:$0xff] %v2204
                  %v2206 = vld [vmem:[%s2180 + $0x60] sm:$0xff]
                  %2207 = vst [vmem:[%s2181 + $0xa0] sm:$0xff] %v2206
                  %v2208 = vld [vmem:[%s2180 + $0x68] sm:$0xff]
                  %2209 = vst [vmem:[%s2181 + $0xa8] sm:$0xff] %v2208
                  %v2210 = vld [vmem:[%s2180 + $0x70] sm:$0xff]
                  %2211 = vst [vmem:[%s2181 + $0xb0] sm:$0xff] %v2210
                  %v2212 = vld [vmem:[%s2180 + $0x78] sm:$0xff]
                  %2213 = vst [vmem:[%s2181 + $0xb8] sm:$0xff] %v2212
                  %v2214 = vld [vmem:[%s2180 + $0x80] sm:$0xff]
                  %2215 = vst [vmem:[%s2181 + $0x100] sm:$0xff] %v2214
                  %v2216 = vld [vmem:[%s2180 + $0x88] sm:$0xff]
                  %2217 = vst [vmem:[%s2181 + $0x108] sm:$0xff] %v2216
                  %v2218 = vld [vmem:[%s2180 + $0x90] sm:$0xff]
                  %2219 = vst [vmem:[%s2181 + $0x110] sm:$0xff] %v2218
                  %v2220 = vld [vmem:[%s2180 + $0x98] sm:$0xff]
                  %2221 = vst [vmem:[%s2181 + $0x118] sm:$0xff] %v2220
                  %v2222 = vld [vmem:[%s2180 + $0xa0] sm:$0xff]
                  %2223 = vst [vmem:[%s2181 + $0x120] sm:$0xff] %v2222
                  %v2224 = vld [vmem:[%s2180 + $0xa8] sm:$0xff]
                  %2225 = vst [vmem:[%s2181 + $0x128] sm:$0xff] %v2224
                  %v2226 = vld [vmem:[%s2180 + $0xb0] sm:$0xff]
                  %2227 = vst [vmem:[%s2181 + $0x130] sm:$0xff] %v2226
                  %v2228 = vld [vmem:[%s2180 + $0xb8] sm:$0xff]
                  %2229 = vst [vmem:[%s2181 + $0x138] sm:$0xff] %v2228
                  %v2230 = vld [vmem:[%s2180 + $0xc0] sm:$0xff]
                  %2231 = vst [vmem:[%s2181 + $0x180] sm:$0xff] %v2230
                  %v2232 = vld [vmem:[%s2180 + $0xc8] sm:$0xff]
                  %2233 = vst [vmem:[%s2181 + $0x188] sm:$0xff] %v2232
                  %v2234 = vld [vmem:[%s2180 + $0xd0] sm:$0xff]
                  %2235 = vst [vmem:[%s2181 + $0x190] sm:$0xff] %v2234
                  %v2236 = vld [vmem:[%s2180 + $0xd8] sm:$0xff]
                  %2237 = vst [vmem:[%s2181 + $0x198] sm:$0xff] %v2236
                  %v2238 = vld [vmem:[%s2180 + $0xe0] sm:$0xff]
                  %2239 = vst [vmem:[%s2181 + $0x1a0] sm:$0xff] %v2238
                  %v2240 = vld [vmem:[%s2180 + $0xe8] sm:$0xff]
                  %2241 = vst [vmem:[%s2181 + $0x1a8] sm:$0xff] %v2240
                  %v2242 = vld [vmem:[%s2180 + $0xf0] sm:$0xff]
                  %2243 = vst [vmem:[%s2181 + $0x1b0] sm:$0xff] %v2242
                  %v2244 = vld [vmem:[%s2180 + $0xf8] sm:$0xff]
                  %2245 = vst [vmem:[%s2181 + $0x1b8] sm:$0xff] %v2244
                $region148: #{_lambda_.1} parent=142 // loop_footer
                  %s2179 = sadd.s32 1, %s2175
                $region149: #{_lambda_.1} parent=142 // loop_footer_branch
                  %2174 = sbr.rel target = $region145
                $region150: #{_lambda_.1} parent=142 // loop_exit
                  _
              $region143: #{_lambda_.1} parent=127 // pred_fallthru
                _
              // Predicated region
              $region151: #{_lambda_.1} parent=127 // pred_check
                _
              $region152: #{_lambda_.1} parent=127 // pred_check_branch
                %2247 = sbr.rel target = $region154
              $region153: #{_lambda_.1} parent=127 // pred_region
                _
              $region154: #{_lambda_.1} parent=127 // pred_fallthru
                _
            $region128: #{_lambda_.1} parent=123 // pred_fallthru
              _
            // Predicated region
            $region129: #{_lambda_.1} parent=123 // pred_check
              _
            $region130: #{_lambda_.1} parent=123 // pred_check_branch
              %2098 = sbr.rel target = $region132
            $region131: #{_lambda_.1} parent=123 // pred_region
              loop: start=0, step=1, limit=1
              $region133: #{_lambda_.1} parent=131 // loop_pre_header
                _
              $region134: #{_lambda_.1} parent=131 // loop_header
                %s2101 = sphi 0, %s2105
                %p2102 = scmp.ge.s32.totalorder %s2101, 1
                %s2106 = sphi %s2086, %s2086
                %s2107 = sphi %s2092, %s2092
              $region135: #{_lambda_.1} parent=131 // loop_header_branch
                %2104 = sbr.rel (%p2102) target = $region139
              $region136: #{_lambda_.1} parent=131 // loop_body
                %v2108 = vld [vmem:[%s2106] sm:$0xff]
                %2109 = vst [vmem:[%s2107] sm:$0xff] %v2108
                %v2110 = vld [vmem:[%s2106 + $0x8] sm:$0xff]
                %2111 = vst [vmem:[%s2107 + $0x8] sm:$0xff] %v2110
                %v2112 = vld [vmem:[%s2106 + $0x10] sm:$0xff]
                %2113 = vst [vmem:[%s2107 + $0x10] sm:$0xff] %v2112
                %v2114 = vld [vmem:[%s2106 + $0x18] sm:$0xff]
                %2115 = vst [vmem:[%s2107 + $0x18] sm:$0xff] %v2114
                %v2116 = vld [vmem:[%s2106 + $0x20] sm:$0xff]
                %2117 = vst [vmem:[%s2107 + $0x20] sm:$0xff] %v2116
                %v2118 = vld [vmem:[%s2106 + $0x28] sm:$0xff]
                %2119 = vst [vmem:[%s2107 + $0x28] sm:$0xff] %v2118
                %v2120 = vld [vmem:[%s2106 + $0x30] sm:$0xff]
                %2121 = vst [vmem:[%s2107 + $0x30] sm:$0xff] %v2120
                %v2122 = vld [vmem:[%s2106 + $0x38] sm:$0xff]
                %2123 = vst [vmem:[%s2107 + $0x38] sm:$0xff] %v2122
                %v2124 = vld [vmem:[%s2106 + $0x40] sm:$0xff]
                %2125 = vst [vmem:[%s2107 + $0x80] sm:$0xff] %v2124
                %v2126 = vld [vmem:[%s2106 + $0x48] sm:$0xff]
                %2127 = vst [vmem:[%s2107 + $0x88] sm:$0xff] %v2126
                %v2128 = vld [vmem:[%s2106 + $0x50] sm:$0xff]
                %2129 = vst [vmem:[%s2107 + $0x90] sm:$0xff] %v2128
                %v2130 = vld [vmem:[%s2106 + $0x58] sm:$0xff]
                %2131 = vst [vmem:[%s2107 + $0x98] sm:$0xff] %v2130
                %v2132 = vld [vmem:[%s2106 + $0x60] sm:$0xff]
                %2133 = vst [vmem:[%s2107 + $0xa0] sm:$0xff] %v2132
                %v2134 = vld [vmem:[%s2106 + $0x68] sm:$0xff]
                %2135 = vst [vmem:[%s2107 + $0xa8] sm:$0xff] %v2134
                %v2136 = vld [vmem:[%s2106 + $0x70] sm:$0xff]
                %2137 = vst [vmem:[%s2107 + $0xb0] sm:$0xff] %v2136
                %v2138 = vld [vmem:[%s2106 + $0x78] sm:$0xff]
                %2139 = vst [vmem:[%s2107 + $0xb8] sm:$0xff] %v2138
                %v2140 = vld [vmem:[%s2106 + $0x80] sm:$0xff]
                %2141 = vst [vmem:[%s2107 + $0x100] sm:$0xff] %v2140
                %v2142 = vld [vmem:[%s2106 + $0x88] sm:$0xff]
                %2143 = vst [vmem:[%s2107 + $0x108] sm:$0xff] %v2142
                %v2144 = vld [vmem:[%s2106 + $0x90] sm:$0xff]
                %2145 = vst [vmem:[%s2107 + $0x110] sm:$0xff] %v2144
                %v2146 = vld [vmem:[%s2106 + $0x98] sm:$0xff]
                %2147 = vst [vmem:[%s2107 + $0x118] sm:$0xff] %v2146
                %v2148 = vld [vmem:[%s2106 + $0xa0] sm:$0xff]
                %2149 = vst [vmem:[%s2107 + $0x120] sm:$0xff] %v2148
                %v2150 = vld [vmem:[%s2106 + $0xa8] sm:$0xff]
                %2151 = vst [vmem:[%s2107 + $0x128] sm:$0xff] %v2150
                %v2152 = vld [vmem:[%s2106 + $0xb0] sm:$0xff]
                %2153 = vst [vmem:[%s2107 + $0x130] sm:$0xff] %v2152
                %v2154 = vld [vmem:[%s2106 + $0xb8] sm:$0xff]
                %2155 = vst [vmem:[%s2107 + $0x138] sm:$0xff] %v2154
                %v2156 = vld [vmem:[%s2106 + $0xc0] sm:$0xff]
                %2157 = vst [vmem:[%s2107 + $0x180] sm:$0xff] %v2156
                %v2158 = vld [vmem:[%s2106 + $0xc8] sm:$0xff]
                %2159 = vst [vmem:[%s2107 + $0x188] sm:$0xff] %v2158
                %v2160 = vld [vmem:[%s2106 + $0xd0] sm:$0xff]
                %2161 = vst [vmem:[%s2107 + $0x190] sm:$0xff] %v2160
                %v2162 = vld [vmem:[%s2106 + $0xd8] sm:$0xff]
                %2163 = vst [vmem:[%s2107 + $0x198] sm:$0xff] %v2162
                %v2164 = vld [vmem:[%s2106 + $0xe0] sm:$0xff]
                %2165 = vst [vmem:[%s2107 + $0x1a0] sm:$0xff] %v2164
                %v2166 = vld [vmem:[%s2106 + $0xe8] sm:$0xff]
                %2167 = vst [vmem:[%s2107 + $0x1a8] sm:$0xff] %v2166
                %v2168 = vld [vmem:[%s2106 + $0xf0] sm:$0xff]
                %2169 = vst [vmem:[%s2107 + $0x1b0] sm:$0xff] %v2168
                %v2170 = vld [vmem:[%s2106 + $0xf8] sm:$0xff]
                %2171 = vst [vmem:[%s2107 + $0x1b8] sm:$0xff] %v2170
              $region137: #{_lambda_.1} parent=131 // loop_footer
                %s2105 = sadd.s32 1, %s2101
              $region138: #{_lambda_.1} parent=131 // loop_footer_branch
                %2100 = sbr.rel target = $region134
              $region139: #{_lambda_.1} parent=131 // loop_exit
                _
            $region132: #{_lambda_.1} parent=123 // pred_fallthru
              _
          $region124: #{_lambda_.1} parent=119 // pred_fallthru
            _
          %2248 = vnop
        $region120: #{_lambda_.1} parent=107 // pred_fallthru
          _
      $region108: #{_lambda_.1} parent=5 // pred_fallthru
        _
      %p2249 = scmp.le.s32.totalorder 2, %s11
      // Predicated region
      $region155: #{_lambda_.1} parent=5 // pred_check
        %p2250 = pneg %p2249
      $region156: #{_lambda_.1} parent=5 // pred_check_branch
        %2252 = sbr.rel (%p2250) target = $region158
      $region157: #{_lambda_.1} parent=5 // pred_region
        %s2253 = ssub.s32 %s11, 2
        // Predicated region
        $region159: #{_lambda_.1} parent=157 // pred_check
          %p2254 = pneg %p155
        $region160: #{_lambda_.1} parent=157 // pred_check_branch
          %2256 = sbr.rel (%p2254) target = $region162
        $region161: #{_lambda_.1} parent=157 // pred_region
          %s2257 = sand.u32 %s140, 1
          %s2258 = sand.u32 %s140, 1
          %s2259 = smul.addr %s2258, 256
          %s2260 = scalar_lea.vmem [#allocation4], %s2259
        $region162: #{_lambda_.1} parent=157 // pred_fallthru
          _
      $region158: #{_lambda_.1} parent=5 // pred_fallthru
        _
    $region6: #{_lambda_.1} parent=1 // loop_footer
      %s15 = sadd.s32 1, %s11
    $region7: #{_lambda_.1} parent=1 // loop_footer_branch
      %10 = sbr.rel target = $region3
    $region8: #{_lambda_.1} parent=1 // loop_exit
      _

</llo_original>
